<compile_context>
chip_gen: v7x
topology: tpu7x:2x2x1
jax: 0.10.0
libtpu: 0.0.40
codegen_flags: <defaults>
</compile_context>

<pallas_src>
import functools

import jax
import jax.numpy as jnp
from jax.experimental import pallas as pl
from jax.experimental.pallas import tpu as pltpu

EPS = 1e-8  # TODO(synk): GlobalLayerNorm source not given; assuming Conv-TasNet gLN eps=1e-8.


def _tcn_concat_block_kernel(
    x_ref,      # (1, T, Cx)   input x (channels-last); also the residual branch
    cond_ref,   # (1, 1, E)    condition row
    w1x_ref,    # (Cx, H)      pointwise conv 1 weight, x slice (pre-transposed)
    w1c_ref,    # (E, H)       pointwise conv 1 weight, condition slice
    dw_ref,     # (K, H)       depthwise conv weight (tap, channel)
    vec_ref,    # (8, H)       rows: b1, gamma1, beta1, db, gamma2, beta2, alpha1, alpha2
    w2_ref,     # (H, Cout)    pointwise conv 2 weight (pre-transposed)
    b2_ref,     # (1, Cout)
    out_ref,    # (1, T, Cout)
    *,
    dilation: int,
    ksize: int,
):
    x = x_ref[0]                                   # (T, Cx)
    T = x.shape[0]
    H = vec_ref.shape[1]
    inv_n = 1.0 / float(T * H)

    b1 = vec_ref[0:1, :]
    g1 = vec_ref[1:2, :]
    be1 = vec_ref[2:3, :]
    db = vec_ref[3:4, :]
    g2 = vec_ref[4:5, :]
    be2 = vec_ref[5:6, :]
    a1 = vec_ref[6:7, :]                           # PReLU alphas broadcast across channels
    a2 = vec_ref[7:8, :]

    # --- pointwise conv 1 on the (virtual) concat [x ; condition] ---
    # TODO(synk): default MXU precision (bf16 passes); pass precision=HIGHEST if
    # bit-level parity with PyTorch fp32 Conv1d is required.
    h = jnp.dot(x, w1x_ref[...], preferred_element_type=jnp.float32)
    # condition is constant over time -> compute its (1, H) contribution once and
    # broadcast over T (use an 8-row broadcast so the matmul LHS is sublane-aligned).
    cond8 = jnp.broadcast_to(cond_ref[0], (8, cond_ref.shape[2]))
    hc = jnp.dot(cond8, w1c_ref[...], preferred_element_type=jnp.float32)[0:1, :]
    h = h + hc + b1

    # --- PReLU 1 ---
    h = jnp.where(h >= 0.0, h, a1 * h)

    # --- GlobalLayerNorm 1 (single pass: sum and sum-of-squares) ---
    s = jnp.sum(h)
    ss = jnp.sum(h * h)
    mean = s * inv_n
    var = jnp.maximum(ss * inv_n - mean * mean, 0.0)
    h = g1 * ((h - mean) * jax.lax.rsqrt(var + EPS)) + be1

    # --- depthwise conv ('same' padding, odd ksize) via XLU rolls + boundary masks ---
    pad = dilation * (ksize - 1) // 2
    t_idx = jax.lax.broadcasted_iota(jnp.int32, (T, H), 0)
    dw = dw_ref[...]                               # (K, H)
    acc = jnp.zeros_like(h)
    for k in range(ksize):                         # static unroll (K is small)
        off = k * dilation - pad                   # this tap reads h[t + off]
        if off == 0:
            tap = h
        elif abs(off) >= T:
            continue                               # tap entirely outside the signal
        else:
            rolled = pltpu.roll(h, (-off) % T, axis=0)
            if off > 0:
                tap = jnp.where(t_idx < T - off, rolled, 0.0)
            else:
                tap = jnp.where(t_idx >= -off, rolled, 0.0)
        acc = acc + dw[k:k + 1, :] * tap
    h = acc + db

    # --- PReLU 2 ---
    h = jnp.where(h >= 0.0, h, a2 * h)

    # --- GlobalLayerNorm 2 ---
    s2 = jnp.sum(h)
    ss2 = jnp.sum(h * h)
    mean2 = s2 * inv_n
    var2 = jnp.maximum(ss2 * inv_n - mean2 * mean2, 0.0)
    h = g2 * ((h - mean2) * jax.lax.rsqrt(var2 + EPS)) + be2

    # --- pointwise conv 2 + residual add (residual comes straight from x_ref) ---
    y = jnp.dot(h, w2_ref[...], preferred_element_type=jnp.float32) + b2_ref[...]
    out_ref[0] = x + y


def _vmem_limit_bytes(T, Cx, E, H, Cout, K):
    f32 = 4
    io = 2 * (T * Cx + E + T * Cout) * f32                       # double-buffered x / cond / out blocks
    params = ((Cx + E + K + 8) * H + H * Cout + Cout) * f32 * 2  # weights (double-buffered)
    work = 8 * T * max(H, Cout, Cx) * f32                        # h + rolled taps + temporaries (generous)
    est = io + params + work
    # Explicit budget with headroom; never exceed v7x's 64 MiB physical VMEM.
    return int(min(64 * 1024 * 1024, max(2 * est, 16 * 1024 * 1024)))


def tcn_concat_block(x, condition, params, *, dilation=1, ksize=3):
    """x: (B, T, Cx), condition: (B, 1, E) -> (B, T, Cx).  Channels-last layout."""
    B, T, Cx = x.shape
    E = condition.shape[-1]
    H = params["w1x"].shape[1]
    K = params["dw"].shape[0]
    Cout = params["w2"].shape[1]
    assert Cout == Cx, "residual add requires out_channels == x channels"

    kernel = functools.partial(_tcn_concat_block_kernel, dilation=dilation, ksize=ksize)
    full = lambda shape: pl.BlockSpec(shape, lambda b: (0,) * len(shape))

    return pl.pallas_call(
        kernel,
        grid=(B,),
        in_specs=[
            pl.BlockSpec((1, T, Cx), lambda b: (b, 0, 0)),   # x (also residual)
            pl.BlockSpec((1, 1, E), lambda b: (b, 0, 0)),    # condition
            full((Cx, H)),                                   # w1x
            full((E, H)),                                    # w1c
            full((K, H)),                                    # dw
            full((8, H)),                                    # packed per-channel vectors + alphas
            full((H, Cout)),                                 # w2
            full((1, Cout)),                                 # b2
        ],
        out_specs=pl.BlockSpec((1, T, Cout), lambda b: (b, 0, 0)),
        out_shape=jax.ShapeDtypeStruct((B, T, Cout), jnp.float32),
        compiler_params=pltpu.CompilerParams(
            dimension_semantics=("parallel",),
            vmem_limit_bytes=_vmem_limit_bytes(T, Cx, E, H, Cout, K),
        ),
    )(x, condition, params["w1x"], params["w1c"], params["dw"],
      params["vecs"], params["w2"], params["b2"])


def init_params(key, x_channels, embed_dim, hidden, out_channels, ksize):
    ks = jax.random.split(key, 7)
    s = 0.05
    vecs = jnp.stack(
        [
            s * jax.random.normal(ks[0], (hidden,), jnp.float32),  # b1
            jnp.ones((hidden,), jnp.float32),                      # gamma1
            jnp.zeros((hidden,), jnp.float32),                     # beta1
            s * jax.random.normal(ks[1], (hidden,), jnp.float32),  # db
            jnp.ones((hidden,), jnp.float32),                      # gamma2
            jnp.zeros((hidden,), jnp.float32),                     # beta2
            jnp.full((hidden,), 0.25, jnp.float32),                # PReLU alpha1 (nn.PReLU default)
            jnp.full((hidden,), 0.25, jnp.float32),                # PReLU alpha2
        ],
        axis=0,
    )
    return {
        "w1x": s * jax.random.normal(ks[2], (x_channels, hidden), jnp.float32),
        "w1c": s * jax.random.normal(ks[3], (embed_dim, hidden), jnp.float32),
        "dw": s * jax.random.normal(ks[4], (ksize, hidden), jnp.float32),
        "vecs": vecs,
        "w2": s * jax.random.normal(ks[5], (hidden, out_channels), jnp.float32),
        "b2": s * jax.random.normal(ks[6], (1, out_channels), jnp.float32),
    }


def tcn_concat_block_reference(x, condition, p, *, dilation=1, ksize=3):
    """Pure-JAX reference (channels-last) mirroring the PyTorch forward."""
    B, T, _ = x.shape
    E = condition.shape[-1]
    vec = p["vecs"]
    b1, g1, be1, db, g2, be2 = (vec[i] for i in range(6))
    a1, a2 = vec[6, 0], vec[7, 0]

    cond_rep = jnp.broadcast_to(condition, (B, T, E))
    x_cat = jnp.concatenate([x, cond_rep], axis=-1)
    w1 = jnp.concatenate([p["w1x"], p["w1c"]], axis=0)
    h = jnp.einsum("bti,ih->bth", x_cat, w1) + b1
    h = jnp.where(h >= 0, h, a1 * h)

    def gln(v, g, be):
        mean = jnp.mean(v, axis=(1, 2), keepdims=True)
        var = jnp.mean((v - mean) ** 2, axis=(1, 2), keepdims=True)
        return g * (v - mean) / jnp.sqrt(var + EPS) + be

    h = gln(h, g1, be1)
    pad = dilation * (ksize - 1) // 2
    hp = jnp.pad(h, ((0, 0), (pad, pad), (0, 0)))
    acc = jnp.zeros_like(h)
    for k in range(ksize):
        acc = acc + p["dw"][k][None, None, :] * jax.lax.dynamic_slice_in_dim(
            hp, k * dilation, T, axis=1)
    h = acc + db
    h = jnp.where(h >= 0, h, a2 * h)
    h = gln(h, g2, be2)
    y = jnp.einsum("bth,ho->bto", h, p["w2"]) + p["b2"][0]
    return x + y


if __name__ == "__main__":
    # Small but lane-dense shapes (channels are 128-wide so every VPU op / output
    # store uses the full 128-lane vreg; PyTorch defaults are 512/256).
    B, T = 2, 64
    x_channels = 128          # == out_channels (residual branch)
    embed_dim = 128           # condition channels; first conv in_channels = 256
    hidden = 128              # depthwise_channels
    ksize = 3
    dilation = 1

    key = jax.random.PRNGKey(0)
    kx, kc, kp = jax.random.split(key, 3)
    x = jax.random.normal(kx, (B, T, x_channels), jnp.float32)
    condition = jax.random.normal(kc, (B, 1, embed_dim), jnp.float32)
    params = init_params(kp, x_channels, embed_dim, hidden, x_channels, ksize)

    out = tcn_concat_block(x, condition, params, dilation=dilation, ksize=ksize)
    jax.block_until_ready(out)
    assert out.shape == (B, T, x_channels)

    ref = tcn_concat_block_reference(x, condition, params, dilation=dilation, ksize=ksize)
    max_diff = float(jnp.max(jnp.abs(out - ref)))
    assert jnp.allclose(out, ref, rtol=2e-2, atol=2e-2), f"max abs diff {max_diff}"

    print("KERNEL_OK")
</pallas_src>

<mosaic_0001>
module attributes {stable_mosaic.version = 11 : i64} {
  func.func @_tcn_concat_block_kernel(%arg0: i32, %arg1: memref<1x64x128xf32, #tpu.memory_space<vmem>>, %arg2: memref<1x1x128xf32, #tpu.memory_space<vmem>>, %arg3: memref<128x128xf32, #tpu.memory_space<vmem>>, %arg4: memref<128x128xf32, #tpu.memory_space<vmem>>, %arg5: memref<3x128xf32, #tpu.memory_space<vmem>>, %arg6: memref<8x128xf32, #tpu.memory_space<vmem>>, %arg7: memref<128x128xf32, #tpu.memory_space<vmem>>, %arg8: memref<1x128xf32, #tpu.memory_space<vmem>>, %arg9: memref<1x64x128xf32, #tpu.memory_space<vmem>>) attributes {dimension_semantics = [#tpu.dimension_semantics<parallel>], iteration_bounds = array<i64: 2>, scalar_prefetch = 0 : i64, scratch_operands = 0 : i64, tpu.core_type = #tpu.core_type<tc>, window_params = [{transform_indices = @transform_0, window_bounds = array<i64: 1, 64, 128>}, {transform_indices = @transform_1, window_bounds = array<i64: 1, 1, 128>}, {pipeline_mode = #tpu.pipeline_mode<synchronous>, transform_indices = @transform_2, window_bounds = array<i64: 128, 128>}, {pipeline_mode = #tpu.pipeline_mode<synchronous>, transform_indices = @transform_3, window_bounds = array<i64: 128, 128>}, {pipeline_mode = #tpu.pipeline_mode<synchronous>, transform_indices = @transform_4, window_bounds = array<i64: 3, 128>}, {pipeline_mode = #tpu.pipeline_mode<synchronous>, transform_indices = @transform_5, window_bounds = array<i64: 8, 128>}, {pipeline_mode = #tpu.pipeline_mode<synchronous>, transform_indices = @transform_6, window_bounds = array<i64: 128, 128>}, {pipeline_mode = #tpu.pipeline_mode<synchronous>, transform_indices = @transform_7, window_bounds = array<i64: 1, 128>}, {transform_indices = @transform_8, window_bounds = array<i64: 1, 64, 128>}]} {
    %c0 = arith.constant 0 : index
    %c0_0 = arith.constant 0 : index
    %c0_1 = arith.constant 0 : index
    %0 = vector.load %arg1[%c0, %c0_0, %c0_1] : memref<1x64x128xf32, #tpu.memory_space<vmem>>, vector<1x64x128xf32>
    %1 = vector.shape_cast %0 : vector<1x64x128xf32> to vector<64x128xf32>
    %c0_2 = arith.constant 0 : index
    %c0_3 = arith.constant 0 : index
    %2 = vector.load %arg6[%c0_2, %c0_3] : memref<8x128xf32, #tpu.memory_space<vmem>>, vector<1x128xf32>
    %c1 = arith.constant 1 : index
    %c0_4 = arith.constant 0 : index
    %3 = vector.load %arg6[%c1, %c0_4] : memref<8x128xf32, #tpu.memory_space<vmem>>, vector<1x128xf32>
    %c2 = arith.constant 2 : index
    %c0_5 = arith.constant 0 : index
    %4 = vector.load %arg6[%c2, %c0_5] : memref<8x128xf32, #tpu.memory_space<vmem>>, vector<1x128xf32>
    %c3 = arith.constant 3 : index
    %c0_6 = arith.constant 0 : index
    %5 = vector.load %arg6[%c3, %c0_6] : memref<8x128xf32, #tpu.memory_space<vmem>>, vector<1x128xf32>
    %c4 = arith.constant 4 : index
    %c0_7 = arith.constant 0 : index
    %6 = vector.load %arg6[%c4, %c0_7] : memref<8x128xf32, #tpu.memory_space<vmem>>, vector<1x128xf32>
    %c5 = arith.constant 5 : index
    %c0_8 = arith.constant 0 : index
    %7 = vector.load %arg6[%c5, %c0_8] : memref<8x128xf32, #tpu.memory_space<vmem>>, vector<1x128xf32>
    %c6 = arith.constant 6 : index
    %c0_9 = arith.constant 0 : index
    %8 = vector.load %arg6[%c6, %c0_9] : memref<8x128xf32, #tpu.memory_space<vmem>>, vector<1x128xf32>
    %c7 = arith.constant 7 : index
    %c0_10 = arith.constant 0 : index
    %9 = vector.load %arg6[%c7, %c0_10] : memref<8x128xf32, #tpu.memory_space<vmem>>, vector<1x128xf32>
    %c0_11 = arith.constant 0 : index
    %c0_12 = arith.constant 0 : index
    %10 = vector.load %arg3[%c0_11, %c0_12] : memref<128x128xf32, #tpu.memory_space<vmem>>, vector<128x128xf32>
    %cst = arith.constant dense<0.000000e+00> : vector<64x128xf32>
    %11 = tpu.matmul %1, %10, %cst {dimension_numbers = #tpu.dot_dimension_numbers<[1], [0], [0], [1], [0, 0, 1, 1], [], []>} : vector<64x128xf32>, vector<128x128xf32>, vector<64x128xf32> -> vector<64x128xf32>
    %c0_13 = arith.constant 0 : index
    %c0_14 = arith.constant 0 : index
    %c0_15 = arith.constant 0 : index
    %12 = vector.load %arg2[%c0_13, %c0_14, %c0_15] : memref<1x1x128xf32, #tpu.memory_space<vmem>>, vector<1x1x128xf32>
    %13 = vector.shape_cast %12 : vector<1x1x128xf32> to vector<1x128xf32>
    %14 = vector.shape_cast %13 : vector<1x128xf32> to vector<1x128xf32>
    %15 = vector.broadcast %14 : vector<1x128xf32> to vector<8x128xf32>
    %c0_16 = arith.constant 0 : index
    %c0_17 = arith.constant 0 : index
    %16 = vector.load %arg4[%c0_16, %c0_17] : memref<128x128xf32, #tpu.memory_space<vmem>>, vector<128x128xf32>
    %cst_18 = arith.constant dense<0.000000e+00> : vector<8x128xf32>
    %17 = tpu.matmul %15, %16, %cst_18 {dimension_numbers = #tpu.dot_dimension_numbers<[1], [0], [0], [1], [0, 0, 1, 1], [], []>} : vector<8x128xf32>, vector<128x128xf32>, vector<8x128xf32> -> vector<8x128xf32>
    %18 = vector.extract_strided_slice %17 {offsets = [0, 0], sizes = [1, 128], strides = [1, 1]} : vector<8x128xf32> to vector<1x128xf32>
    %19 = vector.broadcast %18 : vector<1x128xf32> to vector<64x128xf32>
    %20 = arith.addf %11, %19 : vector<64x128xf32>
    %21 = vector.broadcast %2 : vector<1x128xf32> to vector<64x128xf32>
    %22 = arith.addf %20, %21 : vector<64x128xf32>
    %cst_19 = arith.constant 0.000000e+00 : f32
    %23 = vector.broadcast %cst_19 : f32 to vector<64x128xf32>
    %24 = arith.cmpf oge, %22, %23 : vector<64x128xf32>
    %25 = vector.broadcast %8 : vector<1x128xf32> to vector<64x128xf32>
    %26 = arith.mulf %25, %22 : vector<64x128xf32>
    %27 = arith.select %24, %22, %26 : vector<64x128xi1>, vector<64x128xf32>
    %28 = vector.shape_cast %27 : vector<64x128xf32> to vector<1x64x128xf32>
    %cst_20 = arith.constant dense<0.000000e+00> : vector<1xf32>
    %29 = vector.multi_reduction <add>, %28, %cst_20 [1, 2] : vector<1x64x128xf32> to vector<1xf32>
    %30 = vector.shape_cast %29 : vector<1xf32> to vector<1x1x1xf32>
    %31 = vector.extract %30[0, 0, 0] : f32 from vector<1x1x1xf32>
    %32 = arith.mulf %27, %27 : vector<64x128xf32>
    %33 = vector.shape_cast %32 : vector<64x128xf32> to vector<1x64x128xf32>
    %cst_21 = arith.constant dense<0.000000e+00> : vector<1xf32>
    %34 = vector.multi_reduction <add>, %33, %cst_21 [1, 2] : vector<1x64x128xf32> to vector<1xf32>
    %35 = vector.shape_cast %34 : vector<1xf32> to vector<1x1x1xf32>
    %36 = vector.extract %35[0, 0, 0] : f32 from vector<1x1x1xf32>
    %cst_22 = arith.constant 1.22070313E-4 : f32
    %37 = arith.mulf %31, %cst_22 : f32
    %cst_23 = arith.constant 1.22070313E-4 : f32
    %38 = arith.mulf %36, %cst_23 : f32
    %39 = arith.mulf %37, %37 : f32
    %40 = arith.subf %38, %39 : f32
    %cst_24 = arith.constant 0.000000e+00 : f32
    %41 = arith.maximumf %40, %cst_24 : f32
    %42 = vector.broadcast %37 : f32 to vector<64x128xf32>
    %43 = arith.subf %27, %42 : vector<64x128xf32>
    %cst_25 = arith.constant 9.99999993E-9 : f32
    %44 = arith.addf %41, %cst_25 : f32
    %45 = math.rsqrt %44 : f32
    %46 = vector.broadcast %45 : f32 to vector<64x128xf32>
    %47 = arith.mulf %43, %46 : vector<64x128xf32>
    %48 = vector.broadcast %3 : vector<1x128xf32> to vector<64x128xf32>
    %49 = arith.mulf %48, %47 : vector<64x128xf32>
    %50 = vector.broadcast %4 : vector<1x128xf32> to vector<64x128xf32>
    %51 = arith.addf %49, %50 : vector<64x128xf32>
    %52 = tpu.iota {dimensions = array<i32: 0>} : vector<64x128xi32>
    %c0_26 = arith.constant 0 : index
    %c0_27 = arith.constant 0 : index
    %53 = vector.load %arg5[%c0_26, %c0_27] : memref<3x128xf32, #tpu.memory_space<vmem>>, vector<3x128xf32>
    %cst_28 = arith.constant 0.000000e+00 : f32
    %54 = vector.broadcast %cst_28 : f32 to vector<64x128xf32>
    %c1_i32 = arith.constant 1 : i32
    %55 = tpu.dynamic_rotate %51 by %c1_i32 dim 0 : vector<64x128xf32>, i32 -> vector<64x128xf32>
    %c1_i32_29 = arith.constant 1 : i32
    %56 = vector.broadcast %c1_i32_29 : i32 to vector<64x128xi32>
    %57 = arith.cmpi sge, %52, %56 : vector<64x128xi32>
    %cst_30 = arith.constant 0.000000e+00 : f32
    %58 = vector.broadcast %cst_30 : f32 to vector<64x128xf32>
    %59 = arith.select %57, %55, %58 : vector<64x128xi1>, vector<64x128xf32>
    %60 = vector.extract_strided_slice %53 {offsets = [0, 0], sizes = [1, 128], strides = [1, 1]} : vector<3x128xf32> to vector<1x128xf32>
    %61 = vector.broadcast %60 : vector<1x128xf32> to vector<64x128xf32>
    %62 = arith.mulf %61, %59 : vector<64x128xf32>
    %63 = arith.addf %54, %62 : vector<64x128xf32>
    %64 = vector.extract_strided_slice %53 {offsets = [1, 0], sizes = [1, 128], strides = [1, 1]} : vector<3x128xf32> to vector<1x128xf32>
    %65 = vector.broadcast %64 : vector<1x128xf32> to vector<64x128xf32>
    %66 = arith.mulf %65, %51 : vector<64x128xf32>
    %67 = arith.addf %63, %66 : vector<64x128xf32>
    %c63_i32 = arith.constant 63 : i32
    %68 = tpu.dynamic_rotate %51 by %c63_i32 dim 0 : vector<64x128xf32>, i32 -> vector<64x128xf32>
    %c63_i32_31 = arith.constant 63 : i32
    %69 = vector.broadcast %c63_i32_31 : i32 to vector<64x128xi32>
    %70 = arith.cmpi slt, %52, %69 : vector<64x128xi32>
    %cst_32 = arith.constant 0.000000e+00 : f32
    %71 = vector.broadcast %cst_32 : f32 to vector<64x128xf32>
    %72 = arith.select %70, %68, %71 : vector<64x128xi1>, vector<64x128xf32>
    %73 = vector.extract_strided_slice %53 {offsets = [2, 0], sizes = [1, 128], strides = [1, 1]} : vector<3x128xf32> to vector<1x128xf32>
    %74 = vector.broadcast %73 : vector<1x128xf32> to vector<64x128xf32>
    %75 = arith.mulf %74, %72 : vector<64x128xf32>
    %76 = arith.addf %67, %75 : vector<64x128xf32>
    %77 = vector.broadcast %5 : vector<1x128xf32> to vector<64x128xf32>
    %78 = arith.addf %76, %77 : vector<64x128xf32>
    %cst_33 = arith.constant 0.000000e+00 : f32
    %79 = vector.broadcast %cst_33 : f32 to vector<64x128xf32>
    %80 = arith.cmpf oge, %78, %79 : vector<64x128xf32>
    %81 = vector.broadcast %9 : vector<1x128xf32> to vector<64x128xf32>
    %82 = arith.mulf %81, %78 : vector<64x128xf32>
    %83 = arith.select %80, %78, %82 : vector<64x128xi1>, vector<64x128xf32>
    %84 = vector.shape_cast %83 : vector<64x128xf32> to vector<1x64x128xf32>
    %cst_34 = arith.constant dense<0.000000e+00> : vector<1xf32>
    %85 = vector.multi_reduction <add>, %84, %cst_34 [1, 2] : vector<1x64x128xf32> to vector<1xf32>
    %86 = vector.shape_cast %85 : vector<1xf32> to vector<1x1x1xf32>
    %87 = vector.extract %86[0, 0, 0] : f32 from vector<1x1x1xf32>
    %88 = arith.mulf %83, %83 : vector<64x128xf32>
    %89 = vector.shape_cast %88 : vector<64x128xf32> to vector<1x64x128xf32>
    %cst_35 = arith.constant dense<0.000000e+00> : vector<1xf32>
    %90 = vector.multi_reduction <add>, %89, %cst_35 [1, 2] : vector<1x64x128xf32> to vector<1xf32>
    %91 = vector.shape_cast %90 : vector<1xf32> to vector<1x1x1xf32>
    %92 = vector.extract %91[0, 0, 0] : f32 from vector<1x1x1xf32>
    %cst_36 = arith.constant 1.22070313E-4 : f32
    %93 = arith.mulf %87, %cst_36 : f32
    %cst_37 = arith.constant 1.22070313E-4 : f32
    %94 = arith.mulf %92, %cst_37 : f32
    %95 = arith.mulf %93, %93 : f32
    %96 = arith.subf %94, %95 : f32
    %cst_38 = arith.constant 0.000000e+00 : f32
    %97 = arith.maximumf %96, %cst_38 : f32
    %98 = vector.broadcast %93 : f32 to vector<64x128xf32>
    %99 = arith.subf %83, %98 : vector<64x128xf32>
    %cst_39 = arith.constant 9.99999993E-9 : f32
    %100 = arith.addf %97, %cst_39 : f32
    %101 = math.rsqrt %100 : f32
    %102 = vector.broadcast %101 : f32 to vector<64x128xf32>
    %103 = arith.mulf %99, %102 : vector<64x128xf32>
    %104 = vector.broadcast %6 : vector<1x128xf32> to vector<64x128xf32>
    %105 = arith.mulf %104, %103 : vector<64x128xf32>
    %106 = vector.broadcast %7 : vector<1x128xf32> to vector<64x128xf32>
    %107 = arith.addf %105, %106 : vector<64x128xf32>
    %c0_40 = arith.constant 0 : index
    %c0_41 = arith.constant 0 : index
    %108 = vector.load %arg7[%c0_40, %c0_41] : memref<128x128xf32, #tpu.memory_space<vmem>>, vector<128x128xf32>
    %cst_42 = arith.constant dense<0.000000e+00> : vector<64x128xf32>
    %109 = tpu.matmul %107, %108, %cst_42 {dimension_numbers = #tpu.dot_dimension_numbers<[1], [0], [0], [1], [0, 0, 1, 1], [], []>} : vector<64x128xf32>, vector<128x128xf32>, vector<64x128xf32> -> vector<64x128xf32>
    %c0_43 = arith.constant 0 : index
    %c0_44 = arith.constant 0 : index
    %110 = vector.load %arg8[%c0_43, %c0_44] : memref<1x128xf32, #tpu.memory_space<vmem>>, vector<1x128xf32>
    %111 = vector.broadcast %110 : vector<1x128xf32> to vector<64x128xf32>
    %112 = arith.addf %109, %111 : vector<64x128xf32>
    %113 = arith.addf %1, %112 : vector<64x128xf32>
    %c0_45 = arith.constant 0 : index
    %c0_46 = arith.constant 0 : index
    %c0_47 = arith.constant 0 : index
    %114 = vector.load %arg9[%c0_45, %c0_46, %c0_47] : memref<1x64x128xf32, #tpu.memory_space<vmem>>, vector<1x64x128xf32>
    %115 = vector.shape_cast %114 : vector<1x64x128xf32> to vector<64x128xf32>
    %116 = vector.shape_cast %113 : vector<64x128xf32> to vector<1x64x128xf32>
    tpu.vector_store %arg9[%c0_45, %c0_46, %c0_47], %116 {strides = array<i32>} : memref<1x64x128xf32, #tpu.memory_space<vmem>>, vector<1x64x128xf32>,
    return
  }
  func.func @transform_0(%arg0: i32) -> (i32, i32, i32) {
    %c0_i32 = arith.constant 0 : i32
    %c0_i32_0 = arith.constant 0 : i32
    %c0_i32_1 = arith.constant 0 : i32
    return %arg0, %c0_i32, %c0_i32_0 : i32, i32, i32
  }
  func.func @transform_1(%arg0: i32) -> (i32, i32, i32) {
    %c0_i32 = arith.constant 0 : i32
    %c0_i32_0 = arith.constant 0 : i32
    %c0_i32_1 = arith.constant 0 : i32
    return %arg0, %c0_i32, %c0_i32_0 : i32, i32, i32
  }
  func.func @transform_2(%arg0: i32) -> (i32, i32) {
    %c0_i32 = arith.constant 0 : i32
    %c0_i32_0 = arith.constant 0 : i32
    %c0_i32_1 = arith.constant 0 : i32
    return %c0_i32, %c0_i32_0 : i32, i32
  }
  func.func @transform_3(%arg0: i32) -> (i32, i32) {
    %c0_i32 = arith.constant 0 : i32
    %c0_i32_0 = arith.constant 0 : i32
    %c0_i32_1 = arith.constant 0 : i32
    return %c0_i32, %c0_i32_0 : i32, i32
  }
  func.func @transform_4(%arg0: i32) -> (i32, i32) {
    %c0_i32 = arith.constant 0 : i32
    %c0_i32_0 = arith.constant 0 : i32
    %c0_i32_1 = arith.constant 0 : i32
    return %c0_i32, %c0_i32_0 : i32, i32
  }
  func.func @transform_5(%arg0: i32) -> (i32, i32) {
    %c0_i32 = arith.constant 0 : i32
    %c0_i32_0 = arith.constant 0 : i32
    %c0_i32_1 = arith.constant 0 : i32
    return %c0_i32, %c0_i32_0 : i32, i32
  }
  func.func @transform_6(%arg0: i32) -> (i32, i32) {
    %c0_i32 = arith.constant 0 : i32
    %c0_i32_0 = arith.constant 0 : i32
    %c0_i32_1 = arith.constant 0 : i32
    return %c0_i32, %c0_i32_0 : i32, i32
  }
  func.func @transform_7(%arg0: i32) -> (i32, i32) {
    %c0_i32 = arith.constant 0 : i32
    %c0_i32_0 = arith.constant 0 : i32
    %c0_i32_1 = arith.constant 0 : i32
    return %c0_i32, %c0_i32_0 : i32, i32
  }
  func.func @transform_8(%arg0: i32) -> (i32, i32, i32) {
    %c0_i32 = arith.constant 0 : i32
    %c0_i32_0 = arith.constant 0 : i32
    %c0_i32_1 = arith.constant 0 : i32
    return %arg0, %c0_i32, %c0_i32_0 : i32, i32, i32
  }
}

</mosaic_0001>

<llo_original>
// kernel: tpu_custom_call.1
$region0: #{tpu_custom_call.1}
  #allocation0 [shape = 'u32[]', space=smem, size = 0x4, offset = 0x4, fixed_abs, tag = 'smem constant byte address 0x4 - core index']
  #allocation1 [shape = 'u32[144,128]{1,0:T(1,128)}', space=vmem, size = 0x12000, scoped, tag = 'internal scratch']
  %s0 = inlined_call_operand.hbm [shape: f32[2,64,128], index: 0, kind: input, shape index: {}]
  %s1 = inlined_call_operand.vmem [shape: f32[2,1,128], index: 1, kind: input, shape index: {}]
  %s2 = inlined_call_operand.hbm [shape: f32[128,128], index: 2, kind: input, shape index: {}]
  %s3 = inlined_call_operand.hbm [shape: f32[128,128], index: 3, kind: input, shape index: {}]
  %s4 = inlined_call_operand.vmem [shape: f32[3,128], index: 4, kind: input, shape index: {}]
  %s5 = inlined_call_operand.vmem [shape: f32[8,128], index: 5, kind: input, shape index: {}]
  %s6 = inlined_call_operand.hbm [shape: f32[128,128], index: 6, kind: input, shape index: {}]
  %s7 = inlined_call_operand.vmem [shape: f32[1,128], index: 7, kind: input, shape index: {}]
  %s8 = inlined_call_operand.hbm [shape: f32[2,64,128], index: 8, kind: output, shape index: {}]
  %s9 = sld [smem:[#allocation0]]
  $region81: #{tpu_custom_call.1} parent=0
    _
  %s11 = ssub.s32 1, %s9
  %s12 = scalar_select 0, %s11, %s9
  $region1: #{tpu_custom_call.1} parent=0
    #allocation2 [shape = 'u8[65536]{0}', space=vmem, size = 0x10000, scoped, tag = 'input window, operand 0']
    #allocation3 [shape = 's32[2]{0}', space=sflag, size = 0x8, scoped, tag = 'scoped memory for tpu_custom_call.1']
    #allocation4 [shape = 's32[2]{0}', space=sflag, size = 0x8, scoped, tag = 'scoped memory for tpu_custom_call.1']
    #allocation5 [shape = 'u8[65536]{0}', space=vmem, size = 0x10000, scoped, tag = 'input window, operand 2, single buffered']
    #allocation6 [shape = 's32[1]{0}', space=sflag, size = 0x4, scoped, tag = 'scoped memory for tpu_custom_call.1']
    #allocation7 [shape = 'u8[65536]{0}', space=vmem, size = 0x10000, scoped, tag = 'input window, operand 3, single buffered']
    #allocation8 [shape = 'u8[65536]{0}', space=vmem, size = 0x10000, scoped, tag = 'input window, operand 6, single buffered']
    #allocation9 [shape = 's32[1]{0}', space=sflag, size = 0x4, scoped, tag = 'scoped memory for tpu_custom_call.1']
    #allocation10 [shape = 'u8[65536]{0}', space=vmem, size = 0x10000, scoped, tag = 'output window, operand 0']
    %13 = vsyncpa [#allocation3], 0
    %s14 = scalar_lea.sflag [#allocation3], 1
    %15 = vsyncpa %s14, 0
    %16 = vsyncpa [#allocation6], 0
    %17 = vsyncpa [#allocation9], 0
    %18 = vsyncpa [#allocation4], 0
    %s19 = scalar_lea.sflag [#allocation4], 1
    %20 = vsyncpa %s19, 0
    loop: start=0, step=1, limit=4
    $region2: #{tpu_custom_call.1} parent=1 // loop_pre_header
      _
    $region3: #{tpu_custom_call.1} parent=1 // loop_header
      %s22 = sphi 0, %s26
      %p23 = scmp.ge.s32.totalorder %s22, 4
      %s32 = sphi 0, %s34
      %s35 = sphi 0, %s32
      %s36 = sphi 0, %s35
      %s52 = sphi 0, %s36
      %s58 = sphi 0, %s60
      %s61 = sphi 0, %s58
      %s62 = sphi 0, %s61
      %s78 = sphi 0, %s62
      %s82 = sphi 0, %s82
      %s84 = sphi 0, %s82
      %s85 = sphi 0, %s84
      %s99 = sphi 0, %s85
      %s103 = sphi 0, %s103
      %s105 = sphi 0, %s103
      %s106 = sphi 0, %s105
      %s120 = sphi 0, %s106
      %s124 = sphi 0, %s124
      %s126 = sphi 0, %s124
      %s127 = sphi 0, %s126
      %s141 = sphi 0, %s127
      %s145 = sphi 0, %s145
      %s147 = sphi 0, %s145
      %s148 = sphi 0, %s147
      %s162 = sphi 0, %s148
      %s166 = sphi 0, %s166
      %s168 = sphi 0, %s166
      %s169 = sphi 0, %s168
      %s183 = sphi 0, %s169
      %s187 = sphi 0, %s187
      %s189 = sphi 0, %s187
      %s190 = sphi 0, %s189
      %s204 = sphi 0, %s190
      %s210 = sphi 0, %s212
      %s213 = sphi 0, %s210
      %s214 = sphi 0, %s213
      %s230 = sphi 0, %s214
    $region4: #{tpu_custom_call.1} parent=1 // loop_header_branch
      %25 = sbr.rel (%p23) target = $region8
    $region5: #{tpu_custom_call.1} parent=1 // loop_body
      %s27 = ssub.s32 %s22, 1
      %s28 = ssub.s32 %s22, 2
      %s29 = sadd.s32 %s22, 1
      %s30 = ssub.s32 %s22, %s29
      %p31 = scmp.eq.s32.totalorder %s30, 0
      %s33 = sadd.s32 %s32, 1
      %s34 = scalar_select %p31, %s32, %s33
      %p37 = pneg %p31
      %p38 = scmp.eq.s32.totalorder %s22, 1
      %p39 = por %p37, %p38
      %p40 = scmp.ne.s32.totalorder %s32, %s35
      %p41 = scmp.eq.s32.totalorder %s22, 0
      %p42 = por %p40, %p41
      %p43 = scmp.ne.s32.totalorder %s32, %s35
      %p44 = scmp.eq.s32.totalorder %s27, 1
      %p45 = por %p43, %p44
      %p46 = scmp.ne.s32.totalorder %s35, %s36
      %p47 = scmp.eq.s32.totalorder %s27, 0
      %p48 = por %p46, %p47
      %p49 = scmp.ne.s32.totalorder %s35, %s36
      %p50 = scmp.eq.s32.totalorder %s28, 1
      %p51 = por %p49, %p50
      %p53 = scmp.ne.s32.totalorder %s36, %s52
      %p54 = scmp.eq.s32.totalorder %s28, 0
      %p55 = por %p53, %p54
      %s56 = ssub.s32 %s22, %s29
      %p57 = scmp.eq.s32.totalorder %s56, 0
      %s59 = sadd.s32 %s58, 1
      %s60 = scalar_select %p57, %s58, %s59
      %p63 = pneg %p57
      %p64 = scmp.eq.s32.totalorder %s22, 1
      %p65 = por %p63, %p64
      %p66 = scmp.ne.s32.totalorder %s58, %s61
      %p67 = scmp.eq.s32.totalorder %s22, 0
      %p68 = por %p66, %p67
      %p69 = scmp.ne.s32.totalorder %s58, %s61
      %p70 = scmp.eq.s32.totalorder %s27, 1
      %p71 = por %p69, %p70
      %p72 = scmp.ne.s32.totalorder %s61, %s62
      %p73 = scmp.eq.s32.totalorder %s27, 0
      %p74 = por %p72, %p73
      %p75 = scmp.ne.s32.totalorder %s61, %s62
      %p76 = scmp.eq.s32.totalorder %s28, 1
      %p77 = por %p75, %p76
      %p79 = scmp.ne.s32.totalorder %s62, %s78
      %p80 = scmp.eq.s32.totalorder %s28, 0
      %p81 = por %p79, %p80
      %s83 = sadd.s32 %s82, 1
      %p86 = scmp.eq.s32.totalorder %s22, 1
      %p87 = scmp.ne.s32.totalorder %s82, %s84
      %p88 = scmp.eq.s32.totalorder %s22, 0
      %p89 = por %p87, %p88
      %p90 = scmp.ne.s32.totalorder %s82, %s84
      %p91 = scmp.eq.s32.totalorder %s27, 1
      %p92 = por %p90, %p91
      %p93 = scmp.ne.s32.totalorder %s84, %s85
      %p94 = scmp.eq.s32.totalorder %s27, 0
      %p95 = por %p93, %p94
      %p96 = scmp.ne.s32.totalorder %s84, %s85
      %p97 = scmp.eq.s32.totalorder %s28, 1
      %p98 = por %p96, %p97
      %p100 = scmp.ne.s32.totalorder %s85, %s99
      %p101 = scmp.eq.s32.totalorder %s28, 0
      %p102 = por %p100, %p101
      %s104 = sadd.s32 %s103, 1
      %p107 = scmp.eq.s32.totalorder %s22, 1
      %p108 = scmp.ne.s32.totalorder %s103, %s105
      %p109 = scmp.eq.s32.totalorder %s22, 0
      %p110 = por %p108, %p109
      %p111 = scmp.ne.s32.totalorder %s103, %s105
      %p112 = scmp.eq.s32.totalorder %s27, 1
      %p113 = por %p111, %p112
      %p114 = scmp.ne.s32.totalorder %s105, %s106
      %p115 = scmp.eq.s32.totalorder %s27, 0
      %p116 = por %p114, %p115
      %p117 = scmp.ne.s32.totalorder %s105, %s106
      %p118 = scmp.eq.s32.totalorder %s28, 1
      %p119 = por %p117, %p118
      %p121 = scmp.ne.s32.totalorder %s106, %s120
      %p122 = scmp.eq.s32.totalorder %s28, 0
      %p123 = por %p121, %p122
      %s125 = sadd.s32 %s124, 1
      %p128 = scmp.eq.s32.totalorder %s22, 1
      %p129 = scmp.ne.s32.totalorder %s124, %s126
      %p130 = scmp.eq.s32.totalorder %s22, 0
      %p131 = por %p129, %p130
      %p132 = scmp.ne.s32.totalorder %s124, %s126
      %p133 = scmp.eq.s32.totalorder %s27, 1
      %p134 = por %p132, %p133
      %p135 = scmp.ne.s32.totalorder %s126, %s127
      %p136 = scmp.eq.s32.totalorder %s27, 0
      %p137 = por %p135, %p136
      %p138 = scmp.ne.s32.totalorder %s126, %s127
      %p139 = scmp.eq.s32.totalorder %s28, 1
      %p140 = por %p138, %p139
      %p142 = scmp.ne.s32.totalorder %s127, %s141
      %p143 = scmp.eq.s32.totalorder %s28, 0
      %p144 = por %p142, %p143
      %s146 = sadd.s32 %s145, 1
      %p149 = scmp.eq.s32.totalorder %s22, 1
      %p150 = scmp.ne.s32.totalorder %s145, %s147
      %p151 = scmp.eq.s32.totalorder %s22, 0
      %p152 = por %p150, %p151
      %p153 = scmp.ne.s32.totalorder %s145, %s147
      %p154 = scmp.eq.s32.totalorder %s27, 1
      %p155 = por %p153, %p154
      %p156 = scmp.ne.s32.totalorder %s147, %s148
      %p157 = scmp.eq.s32.totalorder %s27, 0
      %p158 = por %p156, %p157
      %p159 = scmp.ne.s32.totalorder %s147, %s148
      %p160 = scmp.eq.s32.totalorder %s28, 1
      %p161 = por %p159, %p160
      %p163 = scmp.ne.s32.totalorder %s148, %s162
      %p164 = scmp.eq.s32.totalorder %s28, 0
      %p165 = por %p163, %p164
      %s167 = sadd.s32 %s166, 1
      %p170 = scmp.eq.s32.totalorder %s22, 1
      %p171 = scmp.ne.s32.totalorder %s166, %s168
      %p172 = scmp.eq.s32.totalorder %s22, 0
      %p173 = por %p171, %p172
      %p174 = scmp.ne.s32.totalorder %s166, %s168
      %p175 = scmp.eq.s32.totalorder %s27, 1
      %p176 = por %p174, %p175
      %p177 = scmp.ne.s32.totalorder %s168, %s169
      %p178 = scmp.eq.s32.totalorder %s27, 0
      %p179 = por %p177, %p178
      %p180 = scmp.ne.s32.totalorder %s168, %s169
      %p181 = scmp.eq.s32.totalorder %s28, 1
      %p182 = por %p180, %p181
      %p184 = scmp.ne.s32.totalorder %s169, %s183
      %p185 = scmp.eq.s32.totalorder %s28, 0
      %p186 = por %p184, %p185
      %s188 = sadd.s32 %s187, 1
      %p191 = scmp.eq.s32.totalorder %s22, 1
      %p192 = scmp.ne.s32.totalorder %s187, %s189
      %p193 = scmp.eq.s32.totalorder %s22, 0
      %p194 = por %p192, %p193
      %p195 = scmp.ne.s32.totalorder %s187, %s189
      %p196 = scmp.eq.s32.totalorder %s27, 1
      %p197 = por %p195, %p196
      %p198 = scmp.ne.s32.totalorder %s189, %s190
      %p199 = scmp.eq.s32.totalorder %s27, 0
      %p200 = por %p198, %p199
      %p201 = scmp.ne.s32.totalorder %s189, %s190
      %p202 = scmp.eq.s32.totalorder %s28, 1
      %p203 = por %p201, %p202
      %p205 = scmp.ne.s32.totalorder %s190, %s204
      %p206 = scmp.eq.s32.totalorder %s28, 0
      %p207 = por %p205, %p206
      %s208 = ssub.s32 %s22, %s29
      %p209 = scmp.eq.s32.totalorder %s208, 0
      %s211 = sadd.s32 %s210, 1
      %s212 = scalar_select %p209, %s210, %s211
      %p215 = pneg %p209
      %p216 = scmp.eq.s32.totalorder %s22, 1
      %p217 = por %p215, %p216
      %p218 = scmp.ne.s32.totalorder %s210, %s213
      %p219 = scmp.eq.s32.totalorder %s22, 0
      %p220 = por %p218, %p219
      %p221 = scmp.ne.s32.totalorder %s210, %s213
      %p222 = scmp.eq.s32.totalorder %s27, 1
      %p223 = por %p221, %p222
      %p224 = scmp.ne.s32.totalorder %s213, %s214
      %p225 = scmp.eq.s32.totalorder %s27, 0
      %p226 = por %p224, %p225
      %p227 = scmp.ne.s32.totalorder %s213, %s214
      %p228 = scmp.eq.s32.totalorder %s28, 1
      %p229 = por %p227, %p228
      %p231 = scmp.ne.s32.totalorder %s214, %s230
      %p232 = scmp.eq.s32.totalorder %s28, 0
      %p233 = por %p231, %p232
      %p234 = scmp.le.s32.totalorder 1, %s22
      %p235 = scmp.lt.s32.totalorder %s22, 3
      %p236 = pnand %p234, %p235
      %p237 = pneg %p236
      // Predicated region
      $region9: #{tpu_custom_call.1} parent=5 // pred_check
        _
      $region10: #{tpu_custom_call.1} parent=5 // pred_check_branch
        %239 = sbr.rel (%p236) target = $region12
      $region11: #{tpu_custom_call.1} parent=5 // pred_region
        %s240 = ssub.s32 %s22, 1
        // Predicated region
        $region13: #{tpu_custom_call.1} parent=11 // pred_check
          %p241 = pneg %p95
        $region14: #{tpu_custom_call.1} parent=11 // pred_check_branch
          %243 = sbr.rel (%p241) target = $region16
        $region15: #{tpu_custom_call.1} parent=11 // pred_region
          %s245 = ssub.s32 2048, 2048
          %246 = vsyncadd [#allocation6], %s245
          %s247 = sshll.u32 [#allocation5], 4
          %s248 = int_to_ptr.vmem [resolvable:$true] %s247
          %253 = dma.hbm_to_vmem [thread:$0]  %s2, 2048, %s248, [#allocation6], 128, 128, 8
        $region16: #{tpu_custom_call.1} parent=11 // pred_fallthru
          _
        // Predicated region
        $region17: #{tpu_custom_call.1} parent=11 // pred_check
          %p254 = pneg %p116
        $region18: #{tpu_custom_call.1} parent=11 // pred_check_branch
          %256 = sbr.rel (%p254) target = $region20
        $region19: #{tpu_custom_call.1} parent=11 // pred_region
          %s258 = ssub.s32 2048, 2048
          %259 = vsyncadd [#allocation6], %s258
          %s260 = sshll.u32 [#allocation7], 4
          %s261 = int_to_ptr.vmem [resolvable:$true] %s260
          %266 = dma.hbm_to_vmem [thread:$0]  %s3, 2048, %s261, [#allocation6], 128, 128, 8
        $region20: #{tpu_custom_call.1} parent=11 // pred_fallthru
          _
        // Predicated region
        $region21: #{tpu_custom_call.1} parent=11 // pred_check
          %p267 = pneg %p137
        $region22: #{tpu_custom_call.1} parent=11 // pred_check_branch
          %269 = sbr.rel (%p267) target = $region24
        $region23: #{tpu_custom_call.1} parent=11 // pred_region
          _
        $region24: #{tpu_custom_call.1} parent=11 // pred_fallthru
          _
        // Predicated region
        $region25: #{tpu_custom_call.1} parent=11 // pred_check
          %p270 = pneg %p158
        $region26: #{tpu_custom_call.1} parent=11 // pred_check_branch
          %272 = sbr.rel (%p270) target = $region28
        $region27: #{tpu_custom_call.1} parent=11 // pred_region
          _
        $region28: #{tpu_custom_call.1} parent=11 // pred_fallthru
          _
        // Predicated region
        $region29: #{tpu_custom_call.1} parent=11 // pred_check
          %p273 = pneg %p179
        $region30: #{tpu_custom_call.1} parent=11 // pred_check_branch
          %275 = sbr.rel (%p273) target = $region32
        $region31: #{tpu_custom_call.1} parent=11 // pred_region
          %s277 = ssub.s32 2048, 2048
          %278 = vsyncadd [#allocation9], %s277
          %s279 = sshll.u32 [#allocation8], 4
          %s280 = int_to_ptr.vmem [resolvable:$true] %s279
          %285 = dma.hbm_to_vmem [thread:$0]  %s6, 2048, %s280, [#allocation9], 128, 128, 8
        $region32: #{tpu_custom_call.1} parent=11 // pred_fallthru
          _
        // Predicated region
        $region33: #{tpu_custom_call.1} parent=11 // pred_check
          %p286 = pneg %p200
        $region34: #{tpu_custom_call.1} parent=11 // pred_check_branch
          %288 = sbr.rel (%p286) target = $region36
        $region35: #{tpu_custom_call.1} parent=11 // pred_region
          _
        $region36: #{tpu_custom_call.1} parent=11 // pred_fallthru
          _
      $region12: #{tpu_custom_call.1} parent=5 // pred_fallthru
        _
      %p289 = scmp.lt.s32.totalorder %s22, 2
      // Predicated region
      $region37: #{tpu_custom_call.1} parent=5 // pred_check
        %p290 = pneg %p289
      $region38: #{tpu_custom_call.1} parent=5 // pred_check_branch
        %292 = sbr.rel (%p290) target = $region40
      $region39: #{tpu_custom_call.1} parent=5 // pred_region
        // Predicated region
        $region41: #{tpu_custom_call.1} parent=39 // pred_check
          %p293 = pneg %p42
        $region42: #{tpu_custom_call.1} parent=39 // pred_check_branch
          %295 = sbr.rel (%p293) target = $region44
        $region43: #{tpu_custom_call.1} parent=39 // pred_region
          %s296 = sand.u32 %s32, 1
          %s297 = scalar_lea.sflag [#allocation3], %s296
          %s298 = sand.u32 %s32, 1
          %s299 = smul.addr %s298, 64
          %s300 = scalar_lea.vmem [#allocation2], %s299
          %s302 = ssub.s32 1024, 1024
          %303 = vsyncadd %s297, %s302
          %s304 = smul.addr %s22, 8
          %s305 = smul.addr %s304, 128
          %s306 = scalar_lea.hbm %s0, %s305
          %s307 = sshll.u32 %s300, 4
          %s308 = int_to_ptr.vmem [resolvable:$true] %s307
          %313 = dma.hbm_to_vmem [thread:$0]  %s306, 1024, %s308, %s297, 128, 128, 8
        $region44: #{tpu_custom_call.1} parent=39 // pred_fallthru
          _
        // Predicated region
        $region45: #{tpu_custom_call.1} parent=39 // pred_check
          %p314 = pneg %p68
        $region46: #{tpu_custom_call.1} parent=39 // pred_check_branch
          %316 = sbr.rel (%p314) target = $region48
        $region47: #{tpu_custom_call.1} parent=39 // pred_region
          %p317 = scmp.lt.s32.totalorder %s22, 1
          %s318 = scalar_select %p317, %s22, 1
          %s319 = scalar_lea.vmem %s1, %s318
        $region48: #{tpu_custom_call.1} parent=39 // pred_fallthru
          _
      $region40: #{tpu_custom_call.1} parent=5 // pred_fallthru
        _
      %p320 = scmp.le.s32.totalorder 1, %s22
      %p321 = scmp.lt.s32.totalorder %s22, 3
      %p322 = pnand %p320, %p321
      %p323 = pneg %p322
      // Predicated region
      $region49: #{tpu_custom_call.1} parent=5 // pred_check
        _
      $region50: #{tpu_custom_call.1} parent=5 // pred_check_branch
        %325 = sbr.rel (%p322) target = $region52
      $region51: #{tpu_custom_call.1} parent=5 // pred_region
        %s326 = ssub.s32 %s22, 1
        %s327 = sand.u32 %s35, 1
        %s328 = scalar_lea.sflag [#allocation3], %s327
        %s329 = sand.u32 %s35, 1
        %s330 = smul.addr %s329, 64
        %s331 = scalar_lea.vmem [#allocation2], %s330
        // Predicated region
        $region53: #{tpu_custom_call.1} parent=51 // pred_check
          %p332 = pneg %p48
        $region54: #{tpu_custom_call.1} parent=51 // pred_check_branch
          %334 = sbr.rel (%p332) target = $region56
        $region55: #{tpu_custom_call.1} parent=51 // pred_region
          %335 = dma.done %s328, 1024
        $region56: #{tpu_custom_call.1} parent=51 // pred_fallthru
          _
        // Predicated region
        $region57: #{tpu_custom_call.1} parent=51 // pred_check
          %p336 = pneg %p95
        $region58: #{tpu_custom_call.1} parent=51 // pred_check_branch
          %338 = sbr.rel (%p336) target = $region60
        $region59: #{tpu_custom_call.1} parent=51 // pred_region
          %339 = dma.done [#allocation6], 2048
        $region60: #{tpu_custom_call.1} parent=51 // pred_fallthru
          _
        // Predicated region
        $region61: #{tpu_custom_call.1} parent=51 // pred_check
          %p340 = pneg %p116
        $region62: #{tpu_custom_call.1} parent=51 // pred_check_branch
          %342 = sbr.rel (%p340) target = $region64
        $region63: #{tpu_custom_call.1} parent=51 // pred_region
          %343 = dma.done [#allocation6], 2048
        $region64: #{tpu_custom_call.1} parent=51 // pred_fallthru
          _
        // Predicated region
        $region65: #{tpu_custom_call.1} parent=51 // pred_check
          %p344 = pneg %p179
        $region66: #{tpu_custom_call.1} parent=51 // pred_check_branch
          %346 = sbr.rel (%p344) target = $region68
        $region67: #{tpu_custom_call.1} parent=51 // pred_region
          %347 = dma.done [#allocation9], 2048
        $region68: #{tpu_custom_call.1} parent=51 // pred_fallthru
          _
        %s348 = sand.u32 %s35, 1
        %s349 = scalar_lea.sflag [#allocation3], %s348
        %s350 = sand.u32 %s35, 1
        %s351 = smul.addr %s350, 64
        %s352 = scalar_lea.vmem [#allocation2], %s351
        %p353 = pneg %p48
        %p354 = pneg %p45
        %p355 = scmp.lt.s32.totalorder %s27, 1
        %s356 = scalar_select %p355, %s27, 1
        %s357 = scalar_lea.vmem %s1, %s356
        %p358 = pneg %p74
        %p359 = pneg %p71
        %p360 = pneg %p95
        %p361 = pneg %p92
        %p362 = pneg %p116
        %p363 = pneg %p113
        %p364 = pneg %p137
        %p365 = pneg %p134
        %p366 = pneg %p158
        %p367 = pneg %p155
        %p368 = pneg %p179
        %p369 = pneg %p176
        %p370 = pneg %p200
        %p371 = pneg %p197
        %p372 = pneg %p226
        %p373 = pneg %p223
        %s374 = sand.u32 %s213, 1
        %s375 = scalar_lea.sflag [#allocation4], %s374
        %s376 = sand.u32 %s213, 1
        %s377 = smul.addr %s376, 64
        %s378 = scalar_lea.vmem [#allocation10], %s377
        %p379 = scmp.lt.s32.totalorder %s27, 1
        %s380 = scalar_select %p379, %s27, 1
        %s381 = scalar_lea.vmem %s1, %s380
        %v382 = vld [vmem:[%s331] sm:$0xff]
        %v383 = vld [vmem:[%s331 + $0x8] sm:$0xff]
        %v384 = vld [vmem:[%s331 + $0x10] sm:$0xff]
        %v385 = vld [vmem:[%s331 + $0x18] sm:$0xff]
        %v386 = vld [vmem:[%s331 + $0x20] sm:$0xff]
        %v387 = vld [vmem:[%s331 + $0x28] sm:$0xff]
        %v388 = vld [vmem:[%s331 + $0x30] sm:$0xff]
        %v389 = vld [vmem:[%s331 + $0x38] sm:$0xff]
        %v390 = vld [vmem:[%s5] sm:$0x1]
        %v391 = vld [vmem:[%s5 + $0x1] sm:$0x1]
        %v392 = vld [vmem:[%s5 + $0x2] sm:$0x1]
        %v393 = vld [vmem:[%s5 + $0x3] sm:$0x1]
        %v394 = vld [vmem:[%s5 + $0x4] sm:$0x1]
        %v395 = vld [vmem:[%s5 + $0x5] sm:$0x1]
        %v396 = vld [vmem:[%s5 + $0x6] sm:$0x1]
        %v397 = vld [vmem:[%s5 + $0x7] sm:$0x1]
        %v398 = vld [vmem:[#allocation5] sm:$0xff]
        %v399 = vld [vmem:[#allocation5 + $0x8] sm:$0xff]
        %v400 = vld [vmem:[#allocation5 + $0x10] sm:$0xff]
        %v401 = vld [vmem:[#allocation5 + $0x18] sm:$0xff]
        %v402 = vld [vmem:[#allocation5 + $0x20] sm:$0xff]
        %v403 = vld [vmem:[#allocation5 + $0x28] sm:$0xff]
        %v404 = vld [vmem:[#allocation5 + $0x30] sm:$0xff]
        %v405 = vld [vmem:[#allocation5 + $0x38] sm:$0xff]
        %v406 = vld [vmem:[#allocation5 + $0x40] sm:$0xff]
        %v407 = vld [vmem:[#allocation5 + $0x48] sm:$0xff]
        %v408 = vld [vmem:[#allocation5 + $0x50] sm:$0xff]
        %v409 = vld [vmem:[#allocation5 + $0x58] sm:$0xff]
        %v410 = vld [vmem:[#allocation5 + $0x60] sm:$0xff]
        %v411 = vld [vmem:[#allocation5 + $0x68] sm:$0xff]
        %v412 = vld [vmem:[#allocation5 + $0x70] sm:$0xff]
        %v413 = vld [vmem:[#allocation5 + $0x78] sm:$0xff]
        %v414 = vld [vmem:[%s381] sm:$0x1]
        %v416 = vlaneseq
        %v417 = vshrl.u32 %v416, 7
        %v418 = vsub.s32 0, %v417
        %v419 = vrot.slane %v414, %v418
        %v421 = vld [vmem:[#allocation7] sm:$0xff]
        %v422 = vld [vmem:[#allocation7 + $0x8] sm:$0xff]
        %v423 = vld [vmem:[#allocation7 + $0x10] sm:$0xff]
        %v424 = vld [vmem:[#allocation7 + $0x18] sm:$0xff]
        %v425 = vld [vmem:[#allocation7 + $0x20] sm:$0xff]
        %v426 = vld [vmem:[#allocation7 + $0x28] sm:$0xff]
        %v427 = vld [vmem:[#allocation7 + $0x30] sm:$0xff]
        %v428 = vld [vmem:[#allocation7 + $0x38] sm:$0xff]
        %v429 = vld [vmem:[#allocation7 + $0x40] sm:$0xff]
        %v430 = vld [vmem:[#allocation7 + $0x48] sm:$0xff]
        %v431 = vld [vmem:[#allocation7 + $0x50] sm:$0xff]
        %v432 = vld [vmem:[#allocation7 + $0x58] sm:$0xff]
        %v433 = vld [vmem:[#allocation7 + $0x60] sm:$0xff]
        %v434 = vld [vmem:[#allocation7 + $0x68] sm:$0xff]
        %v435 = vld [vmem:[#allocation7 + $0x70] sm:$0xff]
        %v436 = vld [vmem:[#allocation7 + $0x78] sm:$0xff]
        %437 = vmatprep.subr.mxu0 0.0
        %438 = vmatpush1.msra.mxu0 %v421
        %439 = vmatprep.subr.mxu0 0.0
        %440 = vmatpush1.msra.mxu0 %v422
        %441 = vmatprep.subr.mxu0 0.0
        %442 = vmatpush1.msra.mxu0 %v423
        %443 = vmatprep.subr.mxu0 0.0
        %444 = vmatpush1.msra.mxu0 %v424
        %445 = vmatprep.subr.mxu0 0.0
        %446 = vmatpush1.msra.mxu0 %v425
        %447 = vmatprep.subr.mxu0 0.0
        %448 = vmatpush1.msra.mxu0 %v426
        %449 = vmatprep.subr.mxu0 0.0
        %450 = vmatpush1.msra.mxu0 %v427
        %451 = vmatprep.subr.mxu0 0.0
        %452 = vmatpush1.msra.mxu0 %v428
        %453 = vmatprep.subr.mxu0 0.0
        %454 = vmatpush1.msra.mxu0 %v429
        %455 = vmatprep.subr.mxu0 0.0
        %456 = vmatpush1.msra.mxu0 %v430
        %457 = vmatprep.subr.mxu0 0.0
        %458 = vmatpush1.msra.mxu0 %v431
        %459 = vmatprep.subr.mxu0 0.0
        %460 = vmatpush1.msra.mxu0 %v432
        %461 = vmatprep.subr.mxu0 0.0
        %462 = vmatpush1.msra.mxu0 %v433
        %463 = vmatprep.subr.mxu0 0.0
        %464 = vmatpush1.msra.mxu0 %v434
        %465 = vmatprep.subr.mxu0 0.0
        %466 = vmatpush1.msra.mxu0 %v435
        %467 = vmatprep.subr.mxu0 0.0
        %468 = vmatpush1.msra.mxu0 %v436
        %469 = vmatprep.subr.mxu0 0.0
        %470 = vmatpush1.msra.mxu0 0.0
        %471 = vmatprep.subr.mxu0 0.0
        %472 = vmatpush1.msra.mxu0 0.0
        %473 = vmatprep.subr.mxu0 0.0
        %474 = vmatpush1.msra.mxu0 0.0
        %475 = vmatprep.subr.mxu0 0.0
        %476 = vmatpush1.msra.mxu0 0.0
        %477 = vmatprep.subr.mxu0 0.0
        %478 = vmatpush1.msra.mxu0 0.0
        %479 = vmatprep.subr.mxu0 0.0
        %480 = vmatpush1.msra.mxu0 0.0
        %481 = vmatprep.subr.mxu0 0.0
        %482 = vmatpush1.msra.mxu0 0.0
        %483 = vmatprep.subr.mxu0 0.0
        %484 = vmatpush1.msra.mxu0 0.0
        %485 = vmatprep.subr.mxu0 0.0
        %486 = vmatpush1.msra.mxu0 0.0
        %487 = vmatprep.subr.mxu0 0.0
        %488 = vmatpush1.msra.mxu0 0.0
        %489 = vmatprep.subr.mxu0 0.0
        %490 = vmatpush1.msra.mxu0 0.0
        %491 = vmatprep.subr.mxu0 0.0
        %492 = vmatpush1.msra.mxu0 0.0
        %493 = vmatprep.subr.mxu0 0.0
        %494 = vmatpush1.msra.mxu0 0.0
        %495 = vmatprep.subr.mxu0 0.0
        %496 = vmatpush1.msra.mxu0 0.0
        %497 = vmatprep.subr.mxu0 0.0
        %498 = vmatpush1.msra.mxu0 0.0
        %499 = vmatprep.subr.mxu0 0.0
        %500 = vmatpush1.msra.mxu0 0.0
        %501 = vmatprep.mubr.f32.mxu0 0.0
        %502 = vmatmul.mubr.f32.gmra.mrb[0].mxu0 %v419
        %v503 = vpop.f32.mrb[0].mxu0
        %v504 = vadd.f32 0.0, %v503
        %v505 = vpop.f32.mrb[0].mxu0
        %506 = vdwg.mxu0
        %v507 = vlaneseq
        %v508 = vshrl.u32 %v507, 7
        %v509 = vsub.s32 0, %v508
        %v510 = vrot.slane %v504, %v509
        %511 = vmatprep.subr.mxu0 0.0
        %512 = vmatpush1.msra.mxu0 %v398
        %513 = vmatprep.subr.mxu0 0.0
        %514 = vmatpush1.msra.mxu0 %v399
        %515 = vmatprep.subr.mxu0 0.0
        %516 = vmatpush1.msra.mxu0 %v400
        %517 = vmatprep.subr.mxu0 0.0
        %518 = vmatpush1.msra.mxu0 %v401
        %519 = vmatprep.subr.mxu0 0.0
        %520 = vmatpush1.msra.mxu0 %v402
        %521 = vmatprep.subr.mxu0 0.0
        %522 = vmatpush1.msra.mxu0 %v403
        %523 = vmatprep.subr.mxu0 0.0
        %524 = vmatpush1.msra.mxu0 %v404
        %525 = vmatprep.subr.mxu0 0.0
        %526 = vmatpush1.msra.mxu0 %v405
        %527 = vmatprep.subr.mxu0 0.0
        %528 = vmatpush1.msra.mxu0 %v406
        %529 = vmatprep.subr.mxu0 0.0
        %530 = vmatpush1.msra.mxu0 %v407
        %531 = vmatprep.subr.mxu0 0.0
        %532 = vmatpush1.msra.mxu0 %v408
        %533 = vmatprep.subr.mxu0 0.0
        %534 = vmatpush1.msra.mxu0 %v409
        %535 = vmatprep.subr.mxu0 0.0
        %536 = vmatpush1.msra.mxu0 %v410
        %537 = vmatprep.subr.mxu0 0.0
        %538 = vmatpush1.msra.mxu0 %v411
        %539 = vmatprep.subr.mxu0 0.0
        %540 = vmatpush1.msra.mxu0 %v412
        %541 = vmatprep.subr.mxu0 0.0
        %542 = vmatpush1.msra.mxu0 %v413
        %543 = vmatprep.subr.mxu0 0.0
        %544 = vmatpush1.msra.mxu0 0.0
        %545 = vmatprep.subr.mxu0 0.0
        %546 = vmatpush1.msra.mxu0 0.0
        %547 = vmatprep.subr.mxu0 0.0
        %548 = vmatpush1.msra.mxu0 0.0
        %549 = vmatprep.subr.mxu0 0.0
        %550 = vmatpush1.msra.mxu0 0.0
        %551 = vmatprep.subr.mxu0 0.0
        %552 = vmatpush1.msra.mxu0 0.0
        %553 = vmatprep.subr.mxu0 0.0
        %554 = vmatpush1.msra.mxu0 0.0
        %555 = vmatprep.subr.mxu0 0.0
        %556 = vmatpush1.msra.mxu0 0.0
        %557 = vmatprep.subr.mxu0 0.0
        %558 = vmatpush1.msra.mxu0 0.0
        %559 = vmatprep.subr.mxu0 0.0
        %560 = vmatpush1.msra.mxu0 0.0
        %561 = vmatprep.subr.mxu0 0.0
        %562 = vmatpush1.msra.mxu0 0.0
        %563 = vmatprep.subr.mxu0 0.0
        %564 = vmatpush1.msra.mxu0 0.0
        %565 = vmatprep.subr.mxu0 0.0
        %566 = vmatpush1.msra.mxu0 0.0
        %567 = vmatprep.subr.mxu0 0.0
        %568 = vmatpush1.msra.mxu0 0.0
        %569 = vmatprep.subr.mxu0 0.0
        %570 = vmatpush1.msra.mxu0 0.0
        %571 = vmatprep.subr.mxu0 0.0
        %572 = vmatpush1.msra.mxu0 0.0
        %573 = vmatprep.subr.mxu0 0.0
        %574 = vmatpush1.msra.mxu0 0.0
        %575 = vmatprep.mubr.f32.mxu0 0.0
        %576 = vmatmul.mubr.f32.gmra.mrb[0].mxu0 %v382
        %v577 = vpop.f32.mrb[0].mxu0
        %v578 = vadd.f32 %v510, %v577
        %v579 = vpop.f32.mrb[0].mxu0
        %580 = vmatprep.mubr.f32.mxu0 0.0
        %581 = vmatmul.mubr.f32.gmra.mrb[0].mxu0 %v383
        %v582 = vpop.f32.mrb[0].mxu0
        %v583 = vadd.f32 %v510, %v582
        %v584 = vpop.f32.mrb[0].mxu0
        %585 = vmatprep.mubr.f32.mxu0 0.0
        %586 = vmatmul.mubr.f32.gmra.mrb[0].mxu0 %v384
        %v587 = vpop.f32.mrb[0].mxu0
        %v588 = vadd.f32 %v510, %v587
        %v589 = vpop.f32.mrb[0].mxu0
        %590 = vmatprep.mubr.f32.mxu0 0.0
        %591 = vmatmul.mubr.f32.gmra.mrb[0].mxu0 %v385
        %v592 = vpop.f32.mrb[0].mxu0
        %v593 = vadd.f32 %v510, %v592
        %v594 = vpop.f32.mrb[0].mxu0
        %595 = vmatprep.mubr.f32.mxu0 0.0
        %596 = vmatmul.mubr.f32.gmra.mrb[0].mxu0 %v386
        %v597 = vpop.f32.mrb[0].mxu0
        %v598 = vadd.f32 %v510, %v597
        %v599 = vpop.f32.mrb[0].mxu0
        %600 = vmatprep.mubr.f32.mxu0 0.0
        %601 = vmatmul.mubr.f32.gmra.mrb[0].mxu0 %v387
        %v602 = vpop.f32.mrb[0].mxu0
        %v603 = vadd.f32 %v510, %v602
        %v604 = vpop.f32.mrb[0].mxu0
        %605 = vmatprep.mubr.f32.mxu0 0.0
        %606 = vmatmul.mubr.f32.gmra.mrb[0].mxu0 %v388
        %v607 = vpop.f32.mrb[0].mxu0
        %v608 = vadd.f32 %v510, %v607
        %v609 = vpop.f32.mrb[0].mxu0
        %610 = vmatprep.mubr.f32.mxu0 0.0
        %611 = vmatmul.mubr.f32.gmra.mrb[0].mxu0 %v389
        %v612 = vpop.f32.mrb[0].mxu0
        %v613 = vadd.f32 %v510, %v612
        %v614 = vpop.f32.mrb[0].mxu0
        %615 = vdwg.mxu0
        %v616 = vlaneseq
        %v617 = vshrl.u32 %v616, 7
        %v618 = vsub.s32 0, %v617
        %v619 = vrot.slane %v390, %v618
        %v620 = vadd.f32 %v578, %v619
        %v621 = vadd.f32 %v583, %v619
        %v622 = vadd.f32 %v588, %v619
        %v623 = vadd.f32 %v593, %v619
        %v624 = vadd.f32 %v598, %v619
        %v625 = vadd.f32 %v603, %v619
        %v626 = vadd.f32 %v608, %v619
        %v627 = vadd.f32 %v613, %v619
        %vm628 = vcmp.ge.f32.partialorder %v620, 0.0
        %vm629 = vcmp.ge.f32.partialorder %v621, 0.0
        %vm630 = vcmp.ge.f32.partialorder %v622, 0.0
        %vm631 = vcmp.ge.f32.partialorder %v623, 0.0
        %vm632 = vcmp.ge.f32.partialorder %v624, 0.0
        %vm633 = vcmp.ge.f32.partialorder %v625, 0.0
        %vm634 = vcmp.ge.f32.partialorder %v626, 0.0
        %vm635 = vcmp.ge.f32.partialorder %v627, 0.0
        %v636 = vlaneseq
        %v637 = vshrl.u32 %v636, 7
        %v638 = vsub.s32 0, %v637
        %v639 = vrot.slane %v396, %v638
        %v640 = vmul.f32 %v639, %v620
        %v641 = vmul.f32 %v639, %v621
        %v642 = vmul.f32 %v639, %v622
        %v643 = vmul.f32 %v639, %v623
        %v644 = vmul.f32 %v639, %v624
        %v645 = vmul.f32 %v639, %v625
        %v646 = vmul.f32 %v639, %v626
        %v647 = vmul.f32 %v639, %v627
        %v648 = vsel %vm628, %v620, %v640
        %v649 = vsel %vm629, %v621, %v641
        %v650 = vsel %vm630, %v622, %v642
        %v651 = vsel %vm631, %v623, %v643
        %v652 = vsel %vm632, %v624, %v644
        %v653 = vsel %vm633, %v625, %v645
        %v654 = vsel %vm634, %v626, %v646
        %v655 = vsel %vm635, %v627, %v647
        %v656 = vadd.f32 %v648, %v649
        %v657 = vadd.f32 %v656, %v650
        %v658 = vadd.f32 %v657, %v651
        %v659 = vadd.f32 %v658, %v652
        %v660 = vadd.f32 %v659, %v653
        %v661 = vadd.f32 %v660, %v654
        %v662 = vadd.f32 %v661, %v655
        %663 = vadd.xlane.f32.xlu0 %v662
        %v664 = vpop.xlane.xlu0 %663
        %v665 = vrot.slane %v664, 4
        %v666 = vadd.f32 %v664, %v665
        %v667 = vrot.slane %v666, 2
        %v668 = vadd.f32 %v666, %v667
        %v669 = vrot.slane %v668, 1
        %v670 = vadd.f32 %v668, %v669
        %s671 = vtos %v670
        %v672 = vmul.f32 %v648, %v648
        %v673 = vmul.f32 %v649, %v649
        %v674 = vmul.f32 %v650, %v650
        %v675 = vmul.f32 %v651, %v651
        %v676 = vmul.f32 %v652, %v652
        %v677 = vmul.f32 %v653, %v653
        %v678 = vmul.f32 %v654, %v654
        %v679 = vmul.f32 %v655, %v655
        %v680 = vadd.f32 %v672, %v673
        %v681 = vadd.f32 %v680, %v674
        %v682 = vadd.f32 %v681, %v675
        %v683 = vadd.f32 %v682, %v676
        %v684 = vadd.f32 %v683, %v677
        %v685 = vadd.f32 %v684, %v678
        %v686 = vadd.f32 %v685, %v679
        %687 = vadd.xlane.f32.xlu0 %v686
        %v688 = vpop.xlane.xlu0 %687
        %v689 = vrot.slane %v688, 4
        %v690 = vadd.f32 %v688, %v689
        %v691 = vrot.slane %v690, 2
        %v692 = vadd.f32 %v690, %v691
        %v693 = vrot.slane %v692, 1
        %v694 = vadd.f32 %v692, %v693
        %s695 = vtos %v694
        %s696 = smul.f32 %s671, 0.00012207031
        %s697 = smul.f32 %s695, 0.00012207031
        %s698 = smul.f32 %s696, %s696
        %s699 = ssub.f32 %s697, %s698
        %s700 = smax.f32 %s699, 0.0
        %v701 = vstv %s696
        %v702 = vsub.f32 %v648, %v701
        %v703 = vsub.f32 %v649, %v701
        %v704 = vsub.f32 %v650, %v701
        %v705 = vsub.f32 %v651, %v701
        %v706 = vsub.f32 %v652, %v701
        %v707 = vsub.f32 %v653, %v701
        %v708 = vsub.f32 %v654, %v701
        %v709 = vsub.f32 %v655, %v701
        %s710 = sadd.f32 %s700, 1e-08
        %v711 = vstv %s710
        %v712 = vrsqrt.pop %v711
        %s713 = vtos %v712
        %v714 = vstv %s713
        %v715 = vmul.f32 %v702, %v714
        %v716 = vmul.f32 %v703, %v714
        %v717 = vmul.f32 %v704, %v714
        %v718 = vmul.f32 %v705, %v714
        %v719 = vmul.f32 %v706, %v714
        %v720 = vmul.f32 %v707, %v714
        %v721 = vmul.f32 %v708, %v714
        %v722 = vmul.f32 %v709, %v714
        %v723 = vlaneseq
        %v724 = vshrl.u32 %v723, 7
        %v725 = vsub.s32 0, %v724
        %v726 = vrot.slane %v391, %v725
        %v727 = vmul.f32 %v726, %v715
        %v728 = vmul.f32 %v726, %v716
        %v729 = vmul.f32 %v726, %v717
        %v730 = vmul.f32 %v726, %v718
        %v731 = vmul.f32 %v726, %v719
        %v732 = vmul.f32 %v726, %v720
        %v733 = vmul.f32 %v726, %v721
        %v734 = vmul.f32 %v726, %v722
        %v735 = vlaneseq
        %v736 = vshrl.u32 %v735, 7
        %v737 = vsub.s32 0, %v736
        %v738 = vrot.slane %v392, %v737
        %v739 = vadd.f32 %v727, %v738
        %v740 = vadd.f32 %v728, %v738
        %v741 = vadd.f32 %v729, %v738
        %v742 = vadd.f32 %v730, %v738
        %v743 = vadd.f32 %v731, %v738
        %v744 = vadd.f32 %v732, %v738
        %v745 = vadd.f32 %v733, %v738
        %v746 = vadd.f32 %v734, %v738
        %v747 = vlaneseq
        %v748 = vshrl.u32 %v747, 7
        %v749 = vadd.s32 %v748, 8
        %v750 = vadd.s32 %v748, 16
        %v751 = vadd.s32 %v748, 24
        %v752 = vadd.s32 %v748, 32
        %v753 = vadd.s32 %v748, 40
        %v754 = vadd.s32 %v748, 48
        %v755 = vadd.s32 %v748, 56
        %v756 = vld [vmem:[%s4] sm:$0x7]
        %v757 = vrot.slane %v739, 7
        %v758 = vrot.slane %v740, 7
        %v759 = vrot.slane %v741, 7
        %v760 = vrot.slane %v742, 7
        %v761 = vrot.slane %v743, 7
        %v762 = vrot.slane %v744, 7
        %v763 = vrot.slane %v745, 7
        %v764 = vrot.slane %v746, 7
        %vm765 = vcmp.lt.s32.totalorder %v748, 1
        %v766 = vsel %vm765, %v763, %v764
        %v767 = vsel %vm765, %v762, %v763
        %v768 = vsel %vm765, %v761, %v762
        %v769 = vsel %vm765, %v760, %v761
        %v770 = vsel %vm765, %v759, %v760
        %v771 = vsel %vm765, %v758, %v759
        %v772 = vsel %vm765, %v757, %v758
        %v773 = vsel %vm765, %v764, %v757
        %vm774 = vcmp.ge.s32.totalorder %v748, 1
        %vm775 = vcmp.ge.s32.totalorder %v749, 1
        %vm776 = vcmp.ge.s32.totalorder %v750, 1
        %vm777 = vcmp.ge.s32.totalorder %v751, 1
        %vm778 = vcmp.ge.s32.totalorder %v752, 1
        %vm779 = vcmp.ge.s32.totalorder %v753, 1
        %vm780 = vcmp.ge.s32.totalorder %v754, 1
        %vm781 = vcmp.ge.s32.totalorder %v755, 1
        %v782 = vsel %vm774, %v773, 0.0
        %v783 = vsel %vm775, %v772, 0.0
        %v784 = vsel %vm776, %v771, 0.0
        %v785 = vsel %vm777, %v770, 0.0
        %v786 = vsel %vm778, %v769, 0.0
        %v787 = vsel %vm779, %v768, 0.0
        %v788 = vsel %vm780, %v767, 0.0
        %v789 = vsel %vm781, %v766, 0.0
        %v790 = vlaneseq
        %v791 = vshrl.u32 %v790, 7
        %v792 = vsub.s32 0, %v791
        %v793 = vrot.slane %v756, %v792
        %v794 = vmul.f32 %v793, %v782
        %v795 = vmul.f32 %v793, %v783
        %v796 = vmul.f32 %v793, %v784
        %v797 = vmul.f32 %v793, %v785
        %v798 = vmul.f32 %v793, %v786
        %v799 = vmul.f32 %v793, %v787
        %v800 = vmul.f32 %v793, %v788
        %v801 = vmul.f32 %v793, %v789
        %v802 = vadd.f32 %v794, 0.0
        %v803 = vadd.f32 %v795, 0.0
        %v804 = vadd.f32 %v796, 0.0
        %v805 = vadd.f32 %v797, 0.0
        %v806 = vadd.f32 %v798, 0.0
        %v807 = vadd.f32 %v799, 0.0
        %v808 = vadd.f32 %v800, 0.0
        %v809 = vadd.f32 %v801, 0.0
        %v810 = vlaneseq
        %v811 = vshrl.u32 %v810, 7
        %v812 = vsub.s32 1, %v811
        %v813 = vrot.slane %v756, %v812
        %v814 = vmul.f32 %v813, %v739
        %v815 = vmul.f32 %v813, %v740
        %v816 = vmul.f32 %v813, %v741
        %v817 = vmul.f32 %v813, %v742
        %v818 = vmul.f32 %v813, %v743
        %v819 = vmul.f32 %v813, %v744
        %v820 = vmul.f32 %v813, %v745
        %v821 = vmul.f32 %v813, %v746
        %v822 = vadd.f32 %v802, %v814
        %v823 = vadd.f32 %v803, %v815
        %v824 = vadd.f32 %v804, %v816
        %v825 = vadd.f32 %v805, %v817
        %v826 = vadd.f32 %v806, %v818
        %v827 = vadd.f32 %v807, %v819
        %v828 = vadd.f32 %v808, %v820
        %v829 = vadd.f32 %v809, %v821
        %v830 = vrot.slane %v739, 1
        %v831 = vrot.slane %v740, 1
        %v832 = vrot.slane %v741, 1
        %v833 = vrot.slane %v742, 1
        %v834 = vrot.slane %v743, 1
        %v835 = vrot.slane %v744, 1
        %v836 = vrot.slane %v745, 1
        %v837 = vrot.slane %v746, 1
        %vm838 = vcmp.lt.s32.totalorder %v748, 7
        %v839 = vsel %vm838, %v836, %v837
        %v840 = vsel %vm838, %v835, %v836
        %v841 = vsel %vm838, %v834, %v835
        %v842 = vsel %vm838, %v833, %v834
        %v843 = vsel %vm838, %v832, %v833
        %v844 = vsel %vm838, %v831, %v832
        %v845 = vsel %vm838, %v830, %v831
        %v846 = vsel %vm838, %v837, %v830
        %vm847 = vcmp.lt.s32.totalorder %v748, 63
        %vm848 = vcmp.lt.s32.totalorder %v749, 63
        %vm849 = vcmp.lt.s32.totalorder %v750, 63
        %vm850 = vcmp.lt.s32.totalorder %v751, 63
        %vm851 = vcmp.lt.s32.totalorder %v752, 63
        %vm852 = vcmp.lt.s32.totalorder %v753, 63
        %vm853 = vcmp.lt.s32.totalorder %v754, 63
        %vm854 = vcmp.lt.s32.totalorder %v755, 63
        %v855 = vsel %vm847, %v845, 0.0
        %v856 = vsel %vm848, %v844, 0.0
        %v857 = vsel %vm849, %v843, 0.0
        %v858 = vsel %vm850, %v842, 0.0
        %v859 = vsel %vm851, %v841, 0.0
        %v860 = vsel %vm852, %v840, 0.0
        %v861 = vsel %vm853, %v839, 0.0
        %v862 = vsel %vm854, %v846, 0.0
        %v863 = vlaneseq
        %v864 = vshrl.u32 %v863, 7
        %v865 = vsub.s32 2, %v864
        %v866 = vrot.slane %v756, %v865
        %v867 = vmul.f32 %v866, %v855
        %v868 = vmul.f32 %v866, %v856
        %v869 = vmul.f32 %v866, %v857
        %v870 = vmul.f32 %v866, %v858
        %v871 = vmul.f32 %v866, %v859
        %v872 = vmul.f32 %v866, %v860
        %v873 = vmul.f32 %v866, %v861
        %v874 = vmul.f32 %v866, %v862
        %v875 = vadd.f32 %v822, %v867
        %v876 = vadd.f32 %v823, %v868
        %v877 = vadd.f32 %v824, %v869
        %v878 = vadd.f32 %v825, %v870
        %v879 = vadd.f32 %v826, %v871
        %v880 = vadd.f32 %v827, %v872
        %v881 = vadd.f32 %v828, %v873
        %v882 = vadd.f32 %v829, %v874
        %v883 = vlaneseq
        %v884 = vshrl.u32 %v883, 7
        %v885 = vsub.s32 0, %v884
        %v886 = vrot.slane %v393, %v885
        %v887 = vadd.f32 %v875, %v886
        %v888 = vadd.f32 %v876, %v886
        %v889 = vadd.f32 %v877, %v886
        %v890 = vadd.f32 %v878, %v886
        %v891 = vadd.f32 %v879, %v886
        %v892 = vadd.f32 %v880, %v886
        %v893 = vadd.f32 %v881, %v886
        %v894 = vadd.f32 %v882, %v886
        %vm895 = vcmp.ge.f32.partialorder %v887, 0.0
        %vm896 = vcmp.ge.f32.partialorder %v888, 0.0
        %vm897 = vcmp.ge.f32.partialorder %v889, 0.0
        %vm898 = vcmp.ge.f32.partialorder %v890, 0.0
        %vm899 = vcmp.ge.f32.partialorder %v891, 0.0
        %vm900 = vcmp.ge.f32.partialorder %v892, 0.0
        %vm901 = vcmp.ge.f32.partialorder %v893, 0.0
        %vm902 = vcmp.ge.f32.partialorder %v894, 0.0
        %v903 = vlaneseq
        %v904 = vshrl.u32 %v903, 7
        %v905 = vsub.s32 0, %v904
        %v906 = vrot.slane %v397, %v905
        %v907 = vmul.f32 %v906, %v887
        %v908 = vmul.f32 %v906, %v888
        %v909 = vmul.f32 %v906, %v889
        %v910 = vmul.f32 %v906, %v890
        %v911 = vmul.f32 %v906, %v891
        %v912 = vmul.f32 %v906, %v892
        %v913 = vmul.f32 %v906, %v893
        %v914 = vmul.f32 %v906, %v894
        %v915 = vsel %vm895, %v887, %v907
        %v916 = vsel %vm896, %v888, %v908
        %v917 = vsel %vm897, %v889, %v909
        %v918 = vsel %vm898, %v890, %v910
        %v919 = vsel %vm899, %v891, %v911
        %v920 = vsel %vm900, %v892, %v912
        %v921 = vsel %vm901, %v893, %v913
        %v922 = vsel %vm902, %v894, %v914
        %v923 = vadd.f32 %v915, %v916
        %v924 = vadd.f32 %v923, %v917
        %v925 = vadd.f32 %v924, %v918
        %v926 = vadd.f32 %v925, %v919
        %v927 = vadd.f32 %v926, %v920
        %v928 = vadd.f32 %v927, %v921
        %v929 = vadd.f32 %v928, %v922
        %930 = vadd.xlane.f32.xlu0 %v929
        %v931 = vpop.xlane.xlu0 %930
        %v932 = vrot.slane %v931, 4
        %v933 = vadd.f32 %v931, %v932
        %v934 = vrot.slane %v933, 2
        %v935 = vadd.f32 %v933, %v934
        %v936 = vrot.slane %v935, 1
        %v937 = vadd.f32 %v935, %v936
        %s938 = vtos %v937
        %v939 = vmul.f32 %v915, %v915
        %v940 = vmul.f32 %v916, %v916
        %v941 = vmul.f32 %v917, %v917
        %v942 = vmul.f32 %v918, %v918
        %v943 = vmul.f32 %v919, %v919
        %v944 = vmul.f32 %v920, %v920
        %v945 = vmul.f32 %v921, %v921
        %v946 = vmul.f32 %v922, %v922
        %v947 = vadd.f32 %v939, %v940
        %v948 = vadd.f32 %v947, %v941
        %v949 = vadd.f32 %v948, %v942
        %v950 = vadd.f32 %v949, %v943
        %v951 = vadd.f32 %v950, %v944
        %v952 = vadd.f32 %v951, %v945
        %v953 = vadd.f32 %v952, %v946
        %954 = vadd.xlane.f32.xlu0 %v953
        %v955 = vpop.xlane.xlu0 %954
        %v956 = vrot.slane %v955, 4
        %v957 = vadd.f32 %v955, %v956
        %v958 = vrot.slane %v957, 2
        %v959 = vadd.f32 %v957, %v958
        %v960 = vrot.slane %v959, 1
        %v961 = vadd.f32 %v959, %v960
        %s962 = vtos %v961
        %s963 = smul.f32 %s938, 0.00012207031
        %s964 = smul.f32 %s962, 0.00012207031
        %s965 = smul.f32 %s963, %s963
        %s966 = ssub.f32 %s964, %s965
        %s967 = smax.f32 %s966, 0.0
        %v968 = vstv %s963
        %v969 = vsub.f32 %v915, %v968
        %v970 = vsub.f32 %v916, %v968
        %v971 = vsub.f32 %v917, %v968
        %v972 = vsub.f32 %v918, %v968
        %v973 = vsub.f32 %v919, %v968
        %v974 = vsub.f32 %v920, %v968
        %v975 = vsub.f32 %v921, %v968
        %v976 = vsub.f32 %v922, %v968
        %s977 = sadd.f32 %s967, 1e-08
        %v978 = vstv %s977
        %v979 = vrsqrt.pop %v978
        %s980 = vtos %v979
        %v981 = vstv %s980
        %v982 = vmul.f32 %v969, %v981
        %v983 = vmul.f32 %v970, %v981
        %v984 = vmul.f32 %v971, %v981
        %v985 = vmul.f32 %v972, %v981
        %v986 = vmul.f32 %v973, %v981
        %v987 = vmul.f32 %v974, %v981
        %v988 = vmul.f32 %v975, %v981
        %v989 = vmul.f32 %v976, %v981
        %v990 = vlaneseq
        %v991 = vshrl.u32 %v990, 7
        %v992 = vsub.s32 0, %v991
        %v993 = vrot.slane %v394, %v992
        %v994 = vmul.f32 %v993, %v982
        %v995 = vmul.f32 %v993, %v983
        %v996 = vmul.f32 %v993, %v984
        %v997 = vmul.f32 %v993, %v985
        %v998 = vmul.f32 %v993, %v986
        %v999 = vmul.f32 %v993, %v987
        %v1000 = vmul.f32 %v993, %v988
        %v1001 = vmul.f32 %v993, %v989
        %v1002 = vlaneseq
        %v1003 = vshrl.u32 %v1002, 7
        %v1004 = vsub.s32 0, %v1003
        %v1005 = vrot.slane %v395, %v1004
        %v1006 = vadd.f32 %v994, %v1005
        %v1007 = vadd.f32 %v995, %v1005
        %v1008 = vadd.f32 %v996, %v1005
        %v1009 = vadd.f32 %v997, %v1005
        %v1010 = vadd.f32 %v998, %v1005
        %v1011 = vadd.f32 %v999, %v1005
        %v1012 = vadd.f32 %v1000, %v1005
        %v1013 = vadd.f32 %v1001, %v1005
        %v1014 = vld [vmem:[#allocation8] sm:$0xff]
        %v1015 = vld [vmem:[#allocation8 + $0x8] sm:$0xff]
        %v1016 = vld [vmem:[#allocation8 + $0x10] sm:$0xff]
        %v1017 = vld [vmem:[#allocation8 + $0x18] sm:$0xff]
        %v1018 = vld [vmem:[#allocation8 + $0x20] sm:$0xff]
        %v1019 = vld [vmem:[#allocation8 + $0x28] sm:$0xff]
        %v1020 = vld [vmem:[#allocation8 + $0x30] sm:$0xff]
        %v1021 = vld [vmem:[#allocation8 + $0x38] sm:$0xff]
        %v1022 = vld [vmem:[#allocation8 + $0x40] sm:$0xff]
        %v1023 = vld [vmem:[#allocation8 + $0x48] sm:$0xff]
        %v1024 = vld [vmem:[#allocation8 + $0x50] sm:$0xff]
        %v1025 = vld [vmem:[#allocation8 + $0x58] sm:$0xff]
        %v1026 = vld [vmem:[#allocation8 + $0x60] sm:$0xff]
        %v1027 = vld [vmem:[#allocation8 + $0x68] sm:$0xff]
        %v1028 = vld [vmem:[#allocation8 + $0x70] sm:$0xff]
        %v1029 = vld [vmem:[#allocation8 + $0x78] sm:$0xff]
        %v1030 = vld [vmem:[%s7] sm:$0x1]
        %v1032 = vlaneseq
        %v1033 = vshrl.u32 %v1032, 7
        %v1034 = vsub.s32 0, %v1033
        %v1035 = vrot.slane %v1030, %v1034
        %1037 = vmatprep.subr.mxu0 0.0
        %1038 = vmatpush1.msra.mxu0 %v1014
        %1039 = vmatprep.subr.mxu0 0.0
        %1040 = vmatpush1.msra.mxu0 %v1015
        %1041 = vmatprep.subr.mxu0 0.0
        %1042 = vmatpush1.msra.mxu0 %v1016
        %1043 = vmatprep.subr.mxu0 0.0
        %1044 = vmatpush1.msra.mxu0 %v1017
        %1045 = vmatprep.subr.mxu0 0.0
        %1046 = vmatpush1.msra.mxu0 %v1018
        %1047 = vmatprep.subr.mxu0 0.0
        %1048 = vmatpush1.msra.mxu0 %v1019
        %1049 = vmatprep.subr.mxu0 0.0
        %1050 = vmatpush1.msra.mxu0 %v1020
        %1051 = vmatprep.subr.mxu0 0.0
        %1052 = vmatpush1.msra.mxu0 %v1021
        %1053 = vmatprep.subr.mxu0 0.0
        %1054 = vmatpush1.msra.mxu0 %v1022
        %1055 = vmatprep.subr.mxu0 0.0
        %1056 = vmatpush1.msra.mxu0 %v1023
        %1057 = vmatprep.subr.mxu0 0.0
        %1058 = vmatpush1.msra.mxu0 %v1024
        %1059 = vmatprep.subr.mxu0 0.0
        %1060 = vmatpush1.msra.mxu0 %v1025
        %1061 = vmatprep.subr.mxu0 0.0
        %1062 = vmatpush1.msra.mxu0 %v1026
        %1063 = vmatprep.subr.mxu0 0.0
        %1064 = vmatpush1.msra.mxu0 %v1027
        %1065 = vmatprep.subr.mxu0 0.0
        %1066 = vmatpush1.msra.mxu0 %v1028
        %1067 = vmatprep.subr.mxu0 0.0
        %1068 = vmatpush1.msra.mxu0 %v1029
        %1069 = vmatprep.subr.mxu0 0.0
        %1070 = vmatpush1.msra.mxu0 0.0
        %1071 = vmatprep.subr.mxu0 0.0
        %1072 = vmatpush1.msra.mxu0 0.0
        %1073 = vmatprep.subr.mxu0 0.0
        %1074 = vmatpush1.msra.mxu0 0.0
        %1075 = vmatprep.subr.mxu0 0.0
        %1076 = vmatpush1.msra.mxu0 0.0
        %1077 = vmatprep.subr.mxu0 0.0
        %1078 = vmatpush1.msra.mxu0 0.0
        %1079 = vmatprep.subr.mxu0 0.0
        %1080 = vmatpush1.msra.mxu0 0.0
        %1081 = vmatprep.subr.mxu0 0.0
        %1082 = vmatpush1.msra.mxu0 0.0
        %1083 = vmatprep.subr.mxu0 0.0
        %1084 = vmatpush1.msra.mxu0 0.0
        %1085 = vmatprep.subr.mxu0 0.0
        %1086 = vmatpush1.msra.mxu0 0.0
        %1087 = vmatprep.subr.mxu0 0.0
        %1088 = vmatpush1.msra.mxu0 0.0
        %1089 = vmatprep.subr.mxu0 0.0
        %1090 = vmatpush1.msra.mxu0 0.0
        %1091 = vmatprep.subr.mxu0 0.0
        %1092 = vmatpush1.msra.mxu0 0.0
        %1093 = vmatprep.subr.mxu0 0.0
        %1094 = vmatpush1.msra.mxu0 0.0
        %1095 = vmatprep.subr.mxu0 0.0
        %1096 = vmatpush1.msra.mxu0 0.0
        %1097 = vmatprep.subr.mxu0 0.0
        %1098 = vmatpush1.msra.mxu0 0.0
        %1099 = vmatprep.subr.mxu0 0.0
        %1100 = vmatpush1.msra.mxu0 0.0
        %1101 = vmatprep.mubr.f32.mxu0 0.0
        %1102 = vmatmul.mubr.f32.gmra.mrb[0].mxu0 %v1006
        %v1103 = vpop.f32.mrb[0].mxu0
        %v1104 = vadd.f32 %v1035, %v1103
        %v1105 = vpop.f32.mrb[0].mxu0
        %1106 = vmatprep.mubr.f32.mxu0 0.0
        %1107 = vmatmul.mubr.f32.gmra.mrb[0].mxu0 %v1007
        %v1108 = vpop.f32.mrb[0].mxu0
        %v1109 = vadd.f32 %v1035, %v1108
        %v1110 = vpop.f32.mrb[0].mxu0
        %1111 = vmatprep.mubr.f32.mxu0 0.0
        %1112 = vmatmul.mubr.f32.gmra.mrb[0].mxu0 %v1008
        %v1113 = vpop.f32.mrb[0].mxu0
        %v1114 = vadd.f32 %v1035, %v1113
        %v1115 = vpop.f32.mrb[0].mxu0
        %1116 = vmatprep.mubr.f32.mxu0 0.0
        %1117 = vmatmul.mubr.f32.gmra.mrb[0].mxu0 %v1009
        %v1118 = vpop.f32.mrb[0].mxu0
        %v1119 = vadd.f32 %v1035, %v1118
        %v1120 = vpop.f32.mrb[0].mxu0
        %1121 = vmatprep.mubr.f32.mxu0 0.0
        %1122 = vmatmul.mubr.f32.gmra.mrb[0].mxu0 %v1010
        %v1123 = vpop.f32.mrb[0].mxu0
        %v1124 = vadd.f32 %v1035, %v1123
        %v1125 = vpop.f32.mrb[0].mxu0
        %1126 = vmatprep.mubr.f32.mxu0 0.0
        %1127 = vmatmul.mubr.f32.gmra.mrb[0].mxu0 %v1011
        %v1128 = vpop.f32.mrb[0].mxu0
        %v1129 = vadd.f32 %v1035, %v1128
        %v1130 = vpop.f32.mrb[0].mxu0
        %1131 = vmatprep.mubr.f32.mxu0 0.0
        %1132 = vmatmul.mubr.f32.gmra.mrb[0].mxu0 %v1012
        %v1133 = vpop.f32.mrb[0].mxu0
        %v1134 = vadd.f32 %v1035, %v1133
        %v1135 = vpop.f32.mrb[0].mxu0
        %1136 = vmatprep.mubr.f32.mxu0 0.0
        %1137 = vmatmul.mubr.f32.gmra.mrb[0].mxu0 %v1013
        %v1138 = vpop.f32.mrb[0].mxu0
        %v1139 = vadd.f32 %v1035, %v1138
        %v1140 = vpop.f32.mrb[0].mxu0
        %1141 = vdwg.mxu0
        %v1142 = vadd.f32 %v382, %v1104
        %v1143 = vadd.f32 %v383, %v1109
        %v1144 = vadd.f32 %v384, %v1114
        %v1145 = vadd.f32 %v385, %v1119
        %v1146 = vadd.f32 %v386, %v1124
        %v1147 = vadd.f32 %v387, %v1129
        %v1148 = vadd.f32 %v388, %v1134
        %v1149 = vadd.f32 %v389, %v1139
        %1150 = vst [vmem:[%s378] sm:$0xff] %v1142
        %1151 = vst [vmem:[%s378 + $0x8] sm:$0xff] %v1143
        %1152 = vst [vmem:[%s378 + $0x10] sm:$0xff] %v1144
        %1153 = vst [vmem:[%s378 + $0x18] sm:$0xff] %v1145
        %1154 = vst [vmem:[%s378 + $0x20] sm:$0xff] %v1146
        %1155 = vst [vmem:[%s378 + $0x28] sm:$0xff] %v1147
        %1156 = vst [vmem:[%s378 + $0x30] sm:$0xff] %v1148
        %1157 = vst [vmem:[%s378 + $0x38] sm:$0xff] %v1149
        %s1158 = sand.u32 %s213, 1
        %s1159 = scalar_lea.sflag [#allocation4], %s1158
        %s1160 = sand.u32 %s213, 1
        %s1161 = smul.addr %s1160, 64
        %s1162 = scalar_lea.vmem [#allocation10], %s1161
        // Predicated region
        $region69: #{tpu_custom_call.1} parent=51 // pred_check
          %p1163 = pneg %p223
        $region70: #{tpu_custom_call.1} parent=51 // pred_check_branch
          %1165 = sbr.rel (%p1163) target = $region72
        $region71: #{tpu_custom_call.1} parent=51 // pred_region
          %s1167 = ssub.s32 1024, 1024
          %1168 = vsyncadd %s1159, %s1167
          %s1169 = smul.addr %s27, 8
          %s1170 = smul.addr %s1169, 128
          %s1171 = scalar_lea.hbm %s8, %s1170
          %s1172 = sshll.u32 %s1162, 4
          %s1173 = int_to_ptr.vmem [resolvable:$true] %s1172
          %1178 = dma.vmem_to_hbm [thread:$0]  %s1173, 1024, %s1171, %s1159, 128, 128, 8
        $region72: #{tpu_custom_call.1} parent=51 // pred_fallthru
          _
      $region52: #{tpu_custom_call.1} parent=5 // pred_fallthru
        _
      %p1179 = scmp.le.s32.totalorder 2, %s22
      // Predicated region
      $region73: #{tpu_custom_call.1} parent=5 // pred_check
        %p1180 = pneg %p1179
      $region74: #{tpu_custom_call.1} parent=5 // pred_check_branch
        %1182 = sbr.rel (%p1180) target = $region76
      $region75: #{tpu_custom_call.1} parent=5 // pred_region
        %s1183 = ssub.s32 %s22, 2
        // Predicated region
        $region77: #{tpu_custom_call.1} parent=75 // pred_check
          %p1184 = pneg %p229
        $region78: #{tpu_custom_call.1} parent=75 // pred_check_branch
          %1186 = sbr.rel (%p1184) target = $region80
        $region79: #{tpu_custom_call.1} parent=75 // pred_region
          %s1187 = sand.u32 %s214, 1
          %s1188 = scalar_lea.sflag [#allocation4], %s1187
          %s1189 = sand.u32 %s214, 1
          %s1190 = smul.addr %s1189, 64
          %s1191 = scalar_lea.vmem [#allocation10], %s1190
          %1192 = dma.done %s1188, 1024
        $region80: #{tpu_custom_call.1} parent=75 // pred_fallthru
          _
      $region76: #{tpu_custom_call.1} parent=5 // pred_fallthru
        _
    $region6: #{tpu_custom_call.1} parent=1 // loop_footer
      %s26 = sadd.s32 1, %s22
    $region7: #{tpu_custom_call.1} parent=1 // loop_footer_branch
      %21 = sbr.rel target = $region3
    $region8: #{tpu_custom_call.1} parent=1 // loop_exit
      _
    %1193 = vsyncpa [#allocation3], 1
    %s1194 = scalar_lea.sflag [#allocation3], 1
    %1195 = vsyncpa %s1194, 1
    %1196 = vsyncpa [#allocation6], 1
    %1197 = vsyncpa [#allocation9], 1
    %1198 = vsyncpa [#allocation4], 1
    %s1199 = scalar_lea.sflag [#allocation4], 1
    %1200 = vsyncpa %s1199, 1

</llo_original>
